<compile_context>
chip_gen: v7x
topology: tpu7x:2x2x1
jax: 0.10.0
libtpu: 0.0.40
codegen_flags: <defaults>
</compile_context>

<pallas_src>
import jax
import jax.numpy as jnp
from jax.experimental import pallas as pl
from jax.experimental.pallas import tpu as pltpu

HIDDEN = 8       # SelfAttention hidden_dim (default) == MHA "sequence length"
NUM_HEADS = 8    # nn.MultiheadAttention num_heads
CPAD = 8         # all channel dims zero-padded to 8 (one aligned sublane group)
K_CONV = 5       # 'same' Conv1d kernel size
K_UP = 4         # ConvTranspose1d kernel size


# ----------------------------- in-kernel math helpers ------------------------------

def _mish(x):
    # mish(x) = x * tanh(softplus(x)); with y = 1 + exp(x):
    #   tanh(softplus(x)) = (y^2 - 1) / (y^2 + 1)
    # -> one EUP exp + one approx EUP reciprocal (no log / tanh).  Clamp at 20: for
    # x >= 20 the ratio is 1.0 to f32 precision (matches F.mish / softplus).
    y = 1.0 + jnp.exp(jnp.minimum(x, 20.0))
    y2 = y * y
    return x * (y2 - 1.0) * pl.reciprocal(y2 + 1.0, approx=True)


def _rep_rows(x, reps):
    # (r, c) -> (reps*r, c) with row i = x[i % r]; jnp.tile is the supported TPU idiom.
    return jnp.tile(x, (reps, 1))


# ------------------------------ the single fused kernel -----------------------------

def fused_block_kernel(zup_ref, init_ref, conv_w_ref, conv_b_ref, attn_cw_ref,
                       rows_ref, mavg_ref, wqkv_ref, wo_ref, bhm_ref, o_ref):
    f32 = jnp.float32
    NL = o_ref.shape[2]                    # B_TILE * E lanes per activation slab

    rows = rows_ref[...]                   # (16, NL) packed row constants
    mavg = mavg_ref[...]                   # (NL, NL) block-diag ones/E (segmented mean)
    bh_mask = bhm_ref[...]                 # (R, NL)  (batch, head) selection mask

    # --- per-batch-segment conv as ONE matmul: taps = lane rolls + precomputed masks ---
    def conv(act, idx, n_taps):
        taps = []
        for k in range(n_taps):
            s = k - 2                                   # shift ('same' pad = 2)
            if s == 0:
                taps.append(act)
            else:
                taps.append(jnp.roll(act, -s, axis=1) * rows[k:k + 1, :])
        cols = jnp.concatenate(taps, axis=0)            # (n_taps*CPAD, NL), in vregs
        w = conv_w_ref[idx][:, :n_taps * CPAD]          # (CPAD, n_taps*CPAD)
        b = conv_b_ref[:, idx:idx + 1]                  # (CPAD, 1)
        return jnp.dot(w, cols, preferred_element_type=f32) + b

    # --- LayerNorm over each E-lane segment (per row, per tiled batch element) --------
    def layernorm(a, g_row, b_row):
        r = a.shape[0]
        stat = jnp.dot(jnp.concatenate([a, a * a], axis=0), mavg,
                       preferred_element_type=f32)      # [mean(x); mean(x^2)] broadcast
        mu = stat[0:r, :]
        var = stat[r:2 * r, :] - mu * mu
        return (a - mu) * jax.lax.rsqrt(var + 1e-5) * g_row + b_row

    # (1) ConvTranspose1d(4, stride=2, pad=1) == correlation on the zero-stuffed input
    x_up = conv(zup_ref[0], 0, K_UP)                                   # (CPAD, NL)

    # (2) pre_shortcut_convs -> LayerNorm1 -> mish
    sc = _mish(layernorm(conv(x_up, 1, K_CONV), rows[5:6, :], rows[6:7, :]))

    # (3) shortcut_convs
    sc2 = conv(sc, 2, K_CONV)                                          # (CPAD, NL)

    # (4) SelfAttention: LN -> 1x1 qkv conv -> 8-head MHA (all heads & all tiled batch
    #     elements done with masked matmuls) -> 1x1 out conv -> + residual
    xn = layernorm(sc2, rows[7:8, :], rows[8:9, :])
    qkv = jnp.dot(attn_cw_ref[0:3 * HIDDEN, :], xn,
                  preferred_element_type=f32)                          # (3*HIDDEN, NL)
    # fused q/k/v input projections: one dot against [scale*Wq | Wk | Wv] block-diagonals
    qkvp = jnp.dot(qkv, wqkv_ref[...], preferred_element_type=f32)     # (3*HIDDEN, 3*NL)
    qp = qkvp[0:HIDDEN, 0:NL] + rows[11:12, :]          # 1/sqrt(hd) folded into Wq & bq
    kp = qkvp[HIDDEN:2 * HIDDEN, NL:2 * NL] + rows[12:13, :]
    vp = qkvp[2 * HIDDEN:3 * HIDDEN, 2 * NL:3 * NL] + rows[13:14, :]

    reps = bh_mask.shape[0] // HIDDEN                   # B_TILE * NUM_HEADS
    kexp = _rep_rows(kp, reps) * bh_mask                # (R, NL) per-(batch,head) keys
    vexp = _rep_rows(vp, reps) * bh_mask                # (R, NL) per-(batch,head) values

    # scores[i, (b,h,j)]: one transposed-RHS matmul covering all batches & heads
    s = jax.lax.dot_general(qp, kexp, (((1,), (1,)), ((), ())),
                            preferred_element_type=f32)                # (HIDDEN, R)
    s = s - jnp.max(s, axis=-1, keepdims=True)          # per-row shift: softmax-invariant
    p = jnp.exp(s)
    ctx_num = jnp.dot(p, vexp, preferred_element_type=f32)             # (HIDDEN, NL)
    ctx_den = jnp.dot(p, bh_mask, preferred_element_type=f32)          # softmax denom
    ctx = ctx_num / jnp.maximum(ctx_den, 1e-30)         # guard only trips on f32 underflow
    mha = jnp.dot(ctx, wo_ref[...], preferred_element_type=f32) + rows[14:15, :]
    h_out = jnp.dot(attn_cw_ref[3 * HIDDEN:3 * HIDDEN + CPAD, :], mha,
                    preferred_element_type=f32) + conv_b_ref[:, 4:5]   # to_out 1x1 conv
    att = h_out + sc2                                                  # residual

    # (5) post_shortcut_convs -> LayerNorm2 -> mish -> + initial_x
    y = _mish(layernorm(conv(att, 3, K_CONV), rows[9:10, :], rows[10:11, :]))
    o_ref[0] = (y + init_ref[0]).astype(o_ref.dtype)


# --------------------------- one-time parameter preparation -------------------------

def prepare_params(params, batch_tile):
    """One-time layout prep: flips/transposes/channel padding, im2col weight layout,
    block-diagonal attention weights, folded softmax scale, packed constant tensors."""
    f32 = jnp.float32
    E = params["ln1_g"].shape[0]
    NL = batch_tile * E
    hd = E // NUM_HEADS
    R = batch_tile * NUM_HEADS * HIDDEN
    Cin = params["up_w"].shape[0]
    Csh = params["pre_w"].shape[0]
    Cout = params["post_w"].shape[0]
    assert E % NUM_HEADS == 0, "embed dim (2*dim) must be divisible by num_heads"
    assert max(Cin, Csh, Cout) <= CPAD and HIDDEN == CPAD

    def conv_col(w, b):
        # PyTorch Conv1d weight (Co, Ci, K) -> im2col weight (CPAD, K_CONV*CPAD); unused
        # taps / channels stay zero so padded rows contribute exactly zero in-kernel.
        Co, Ci, K = w.shape
        wc = jnp.zeros((CPAD, K_CONV, CPAD), f32).at[:Co, :K, :Ci].set(
            jnp.transpose(w, (0, 2, 1)))
        bc = jnp.zeros((CPAD,), f32).at[:Co].set(b)
        return wc.reshape(CPAD, K_CONV * CPAD), bc

    # ConvTranspose1d(K=4, s=2, p=1) == correlation (on the zero-stuffed input) with the
    # flipped + channel-swapped kernel: w_corr[co, ci, k] = w_pt[ci, co, K-1-k].
    up_corr = jnp.transpose(jnp.flip(params["up_w"], axis=2), (1, 0, 2))
    w_up, b_up = conv_col(up_corr, params["up_b"])
    w_pre, b_pre = conv_col(params["pre_w"], params["pre_b"])
    w_sc, b_sc = conv_col(params["sc_w"], params["sc_b"])
    w_post, b_post = conv_col(params["post_w"], params["post_b"])
    conv_w = jnp.stack([w_up, w_pre, w_sc, w_post], axis=0)           # (4, CPAD, 40)
    proj_b = jnp.zeros((CPAD,), f32).at[:Csh].set(params["to_out_b"])
    conv_b = jnp.stack([b_up, b_pre, b_sc, b_post, proj_b], axis=1)   # (CPAD, 5)

    # attention 1x1 convs: to_qkv (24, Csh) and to_out (Csh, 8), channel padded + stacked
    qkv_w = jnp.zeros((3 * HIDDEN, CPAD), f32).at[:, :Csh].set(params["qkv_w"])
    proj_w = jnp.zeros((CPAD, HIDDEN), f32).at[:Csh, :].set(params["to_out_w"])
    attn_cw = jnp.concatenate([qkv_w, proj_w], axis=0)                # (3*HIDDEN+CPAD, 8)

    # Packed per-lane row constants (16, NL):
    #   0..4   conv shift masks for shifts -2..+2 (per-batch-segment 'same' padding)
    #   5..10  LayerNorm1 g/b, attention-LN g/b, LayerNorm2 g/b (tiled per batch element)
    #   11..14 MHA in-proj biases bq (pre-scaled), bk, bv and out-proj bias bo (tiled)
    lane = jnp.arange(NL)
    jmod = lane % E
    masks = [((jmod + s >= 0) & (jmod + s < E)).astype(f32) for s in range(-2, 3)]
    tile_row = lambda v: jnp.tile(v.astype(f32), batch_tile)
    scale = 1.0 / float(hd) ** 0.5
    in_w, in_b = params["mha_in_w"], params["mha_in_b"]
    rows = jnp.stack(masks + [
        tile_row(params["ln1_g"]), tile_row(params["ln1_b"]),
        tile_row(params["attn_ln_g"]), tile_row(params["attn_ln_b"]),
        tile_row(params["ln2_g"]), tile_row(params["ln2_b"]),
        tile_row(in_b[0:E] * scale), tile_row(in_b[E:2 * E]), tile_row(in_b[2 * E:3 * E]),
        tile_row(params["mha_out_b"]),
        jnp.zeros((NL,), f32),
    ], axis=0)                                                        # (16, NL)

    # Segmented-mean matrix (block-diag ones/E) for the per-segment LayerNorms.
    same_b = ((lane[:, None] // E) == (lane[None, :] // E)).astype(f32)
    mavg = same_b / float(E)                                          # (NL, NL)

    # Block-diagonal MHA projection weights shared by all lane-tiled batch elements;
    # the 1/sqrt(head_dim) query scaling is folded into Wq / bq.
    eye_b = jnp.eye(batch_tile, dtype=f32)
    wq_t = jnp.transpose(in_w[0:E, :]) * scale
    wk_t = jnp.transpose(in_w[E:2 * E, :])
    wv_t = jnp.transpose(in_w[2 * E:3 * E, :])
    wqkv = jnp.concatenate([jnp.kron(eye_b, wq_t), jnp.kron(eye_b, wk_t),
                            jnp.kron(eye_b, wv_t)], axis=1)           # (NL, 3*NL)
    wo = jnp.kron(eye_b, jnp.transpose(params["mha_out_w"]))          # (NL, NL)

    # (batch, head) selection mask: row (b,h,j) x lane (b',e) -> 1 iff b==b' & head(e)==h.
    ridx = jnp.arange(R)
    rb = ridx // (NUM_HEADS * HIDDEN)
    rh = (ridx // HIDDEN) % NUM_HEADS
    bh_mask = ((rb[:, None] == (lane // E)[None, :]) &
               (rh[:, None] == (jmod // hd)[None, :])).astype(f32)    # (R, NL)

    return dict(conv_w=conv_w, conv_b=conv_b, attn_cw=attn_cw, rows=rows,
                mavg=mavg, wqkv=wqkv, wo=wo, bh_mask=bh_mask)


_CONST_ORDER = ("conv_w", "conv_b", "attn_cw", "rows", "mavg", "wqkv", "wo", "bh_mask")


def _pick_batch_tile(batch, embed):
    # Largest divisor of `batch` keeping the lane-concatenated slab width <= 128 (one
    # full vreg row).  With the demo shapes this gives B_TILE=4 -> grid=(2,), which also
    # keeps both v7x TensorCores busy via dimension_semantics=("parallel",).
    cap = max(1, 128 // embed)
    best = 1
    for d in range(1, min(batch, cap) + 1):
        if batch % d == 0:
            best = d
    return best


# ----------------------------------- forward (glue) ---------------------------------

def upsampling_block_forward(x, t, prepped):
    del t  # `t` is an argument of the PyTorch forward but is never used there
    B, Cin, L = x.shape
    E = 2 * L
    Ch = Cin // 2            # == n_outputs (required by the `out + initial_x` residual)
    NL = prepped["rows"].shape[1]
    BT = NL // E             # batch elements per grid step (lane batch tile)
    assert B % BT == 0, (B, BT)
    G = B // BT

    # Tiny layout-only glue on the raw input (lane interleaving has no cheap in-kernel
    # equivalent); everything downstream is fused into one pallas_call.
    # PixelShuffle1D(2):
    init = x.reshape(B, 2, Ch, L).transpose(0, 2, 3, 1).reshape(B, Ch, E)
    init = jnp.pad(init, ((0, 0), (0, CPAD - Ch), (0, 0)))
    # zero-stuff so ConvTranspose1d(4, stride=2, pad=1) becomes a plain correlation:
    z = jnp.stack([x, jnp.zeros_like(x)], axis=-1).reshape(B, Cin, E)
    z = jnp.pad(z, ((0, 0), (0, CPAD - Cin), (0, 0)))

    def group(a):            # (B, CPAD, E) -> (G, CPAD, BT*E): batch tiled along lanes
        return a.reshape(G, BT, CPAD, E).transpose(0, 2, 1, 3).reshape(G, CPAD, NL)

    consts = [prepped[k] for k in _CONST_ORDER]
    const_specs = [pl.BlockSpec(a.shape, lambda g, n=a.ndim: (0,) * n) for a in consts]

    out = pl.pallas_call(
        fused_block_kernel,
        out_shape=jax.ShapeDtypeStruct((G, CPAD, NL), jnp.float32),
        grid=(G,),
        in_specs=[pl.BlockSpec((1, CPAD, NL), lambda g: (g, 0, 0)),
                  pl.BlockSpec((1, CPAD, NL), lambda g: (g, 0, 0))] + const_specs,
        out_specs=pl.BlockSpec((1, CPAD, NL), lambda g: (g, 0, 0)),
        compiler_params=pltpu.CompilerParams(dimension_semantics=("parallel",)),
    )(group(z), group(init), *consts)

    # undo the lane batch tiling and drop the padded channels
    out = out.reshape(G, CPAD, BT, E).transpose(0, 2, 1, 3).reshape(B, CPAD, E)
    return out[:, :Ch, :]


# -------------------------------------- main ----------------------------------------

if __name__ == "__main__":
    key = jax.random.PRNGKey(0)
    # n_outputs == n_inputs // 2 (required by the `out + initial_x` residual) and
    # L == dim (required by LayerNorm(2*dim)).  B=8 -> lane batch tile 4, grid=(2,).
    B, n_inputs, n_outputs, dim = 8, 8, 4, 16
    L = dim
    n_shortcut = (n_inputs + n_outputs) // 2
    E = 2 * dim

    keys = jax.random.split(key, 20)

    def w(k, shape, scale=0.1):
        return (scale * jax.random.normal(k, shape)).astype(jnp.float32)

    params = dict(
        up_w=w(keys[0], (n_inputs, n_inputs, 4)),       # ConvTranspose1d weight (Cin, Cout, K)
        up_b=w(keys[1], (n_inputs,)),
        pre_w=w(keys[2], (n_shortcut, n_inputs, 5)),
        pre_b=w(keys[3], (n_shortcut,)),
        ln1_g=jnp.ones((E,), jnp.float32),
        ln1_b=jnp.zeros((E,), jnp.float32),
        sc_w=w(keys[4], (n_shortcut, n_shortcut, 5)),
        sc_b=w(keys[5], (n_shortcut,)),
        attn_ln_g=jnp.ones((E,), jnp.float32),
        attn_ln_b=jnp.zeros((E,), jnp.float32),
        qkv_w=w(keys[6], (3 * HIDDEN, n_shortcut)),     # Conv1d(Csh, 24, 1, bias=False), squeezed
        to_out_w=w(keys[7], (n_shortcut, HIDDEN)),      # Conv1d(8, Csh, 1), squeezed
        to_out_b=w(keys[8], (n_shortcut,)),
        mha_in_w=w(keys[9], (3 * E, E)),                # MultiheadAttention in_proj_weight
        mha_in_b=w(keys[10], (3 * E,)),
        mha_out_w=w(keys[11], (E, E)),                  # MultiheadAttention out_proj
        mha_out_b=w(keys[12], (E,)),
        post_w=w(keys[13], (n_outputs, n_shortcut, 5)),
        post_b=w(keys[14], (n_outputs,)),
        ln2_g=jnp.ones((E,), jnp.float32),
        ln2_b=jnp.zeros((E,), jnp.float32),
    )

    bt = _pick_batch_tile(B, E)
    prepped = prepare_params(params, bt)                # one-time layout prep (hoisted)

    x = jax.random.normal(keys[15], (B, n_inputs, L), dtype=jnp.float32)
    t = jax.random.normal(keys[16], (B,), dtype=jnp.float32)  # unused by forward, as in PyTorch

    fwd = jax.jit(upsampling_block_forward)
    out = jax.block_until_ready(fwd(x, t, prepped))

    assert out.shape == (B, n_outputs, 2 * L), out.shape
    assert bool(jnp.all(jnp.isfinite(out)))
    print("KERNEL_OK")
</pallas_src>

<mosaic_0001>
module attributes {stable_mosaic.version = 11 : i64} {
  func.func @fused_block_kernel(%arg0: i32, %arg1: memref<1x8x128xf32, #tpu.memory_space<vmem>>, %arg2: memref<1x8x128xf32, #tpu.memory_space<vmem>>, %arg3: memref<4x8x40xf32, #tpu.memory_space<vmem>>, %arg4: memref<8x5xf32, #tpu.memory_space<vmem>>, %arg5: memref<32x8xf32, #tpu.memory_space<vmem>>, %arg6: memref<16x128xf32, #tpu.memory_space<vmem>>, %arg7: memref<128x128xf32, #tpu.memory_space<vmem>>, %arg8: memref<128x384xf32, #tpu.memory_space<vmem>>, %arg9: memref<128x128xf32, #tpu.memory_space<vmem>>, %arg10: memref<256x128xf32, #tpu.memory_space<vmem>>, %arg11: memref<1x8x128xf32, #tpu.memory_space<vmem>>) attributes {dimension_semantics = [#tpu.dimension_semantics<parallel>], iteration_bounds = array<i64: 2>, scalar_prefetch = 0 : i64, scratch_operands = 0 : i64, tpu.core_type = #tpu.core_type<tc>, window_params = [{transform_indices = @transform_0, window_bounds = array<i64: 1, 8, 128>}, {transform_indices = @transform_1, window_bounds = array<i64: 1, 8, 128>}, {pipeline_mode = #tpu.pipeline_mode<synchronous>, transform_indices = @transform_2, window_bounds = array<i64: 4, 8, 40>}, {pipeline_mode = #tpu.pipeline_mode<synchronous>, transform_indices = @transform_3, window_bounds = array<i64: 8, 5>}, {pipeline_mode = #tpu.pipeline_mode<synchronous>, transform_indices = @transform_4, window_bounds = array<i64: 32, 8>}, {pipeline_mode = #tpu.pipeline_mode<synchronous>, transform_indices = @transform_5, window_bounds = array<i64: 16, 128>}, {pipeline_mode = #tpu.pipeline_mode<synchronous>, transform_indices = @transform_6, window_bounds = array<i64: 128, 128>}, {pipeline_mode = #tpu.pipeline_mode<synchronous>, transform_indices = @transform_7, window_bounds = array<i64: 128, 384>}, {pipeline_mode = #tpu.pipeline_mode<synchronous>, transform_indices = @transform_8, window_bounds = array<i64: 128, 128>}, {pipeline_mode = #tpu.pipeline_mode<synchronous>, transform_indices = @transform_9, window_bounds = array<i64: 256, 128>}, {transform_indices = @transform_10, window_bounds = array<i64: 1, 8, 128>}]} {
    %c0 = arith.constant 0 : index
    %c0_0 = arith.constant 0 : index
    %0 = vector.load %arg6[%c0, %c0_0] : memref<16x128xf32, #tpu.memory_space<vmem>>, vector<16x128xf32>
    %c0_1 = arith.constant 0 : index
    %c0_2 = arith.constant 0 : index
    %1 = vector.load %arg7[%c0_1, %c0_2] : memref<128x128xf32, #tpu.memory_space<vmem>>, vector<128x128xf32>
    %c0_3 = arith.constant 0 : index
    %c0_4 = arith.constant 0 : index
    %2 = vector.load %arg10[%c0_3, %c0_4] : memref<256x128xf32, #tpu.memory_space<vmem>>, vector<256x128xf32>
    %c0_5 = arith.constant 0 : index
    %c0_6 = arith.constant 0 : index
    %c0_7 = arith.constant 0 : index
    %3 = vector.load %arg1[%c0_5, %c0_6, %c0_7] : memref<1x8x128xf32, #tpu.memory_space<vmem>>, vector<1x8x128xf32>
    %4 = vector.shape_cast %3 : vector<1x8x128xf32> to vector<8x128xf32>
    %5 = vector.extract_strided_slice %4 {offsets = [0, 126], sizes = [8, 2], strides = [1, 1]} : vector<8x128xf32> to vector<8x2xf32>
    %6 = vector.extract_strided_slice %4 {offsets = [0, 0], sizes = [8, 126], strides = [1, 1]} : vector<8x128xf32> to vector<8x126xf32>
    %7 = tpu.concatenate %5, %6 in 1 : vector<8x2xf32>, vector<8x126xf32> -> vector<8x128xf32>
    %8 = vector.extract_strided_slice %0 {offsets = [0, 0], sizes = [1, 128], strides = [1, 1]} : vector<16x128xf32> to vector<1x128xf32>
    %9 = vector.broadcast %8 : vector<1x128xf32> to vector<8x128xf32>
    %10 = arith.mulf %7, %9 : vector<8x128xf32>
    %11 = vector.extract_strided_slice %4 {offsets = [0, 127], sizes = [8, 1], strides = [1, 1]} : vector<8x128xf32> to vector<8x1xf32>
    %12 = vector.extract_strided_slice %4 {offsets = [0, 0], sizes = [8, 127], strides = [1, 1]} : vector<8x128xf32> to vector<8x127xf32>
    %13 = tpu.concatenate %11, %12 in 1 : vector<8x1xf32>, vector<8x127xf32> -> vector<8x128xf32>
    %14 = vector.extract_strided_slice %0 {offsets = [1, 0], sizes = [1, 128], strides = [1, 1]} : vector<16x128xf32> to vector<1x128xf32>
    %15 = vector.broadcast %14 : vector<1x128xf32> to vector<8x128xf32>
    %16 = arith.mulf %13, %15 : vector<8x128xf32>
    %17 = vector.extract_strided_slice %4 {offsets = [0, 1], sizes = [8, 127], strides = [1, 1]} : vector<8x128xf32> to vector<8x127xf32>
    %18 = vector.extract_strided_slice %4 {offsets = [0, 0], sizes = [8, 1], strides = [1, 1]} : vector<8x128xf32> to vector<8x1xf32>
    %19 = tpu.concatenate %17, %18 in 1 : vector<8x127xf32>, vector<8x1xf32> -> vector<8x128xf32>
    %20 = vector.extract_strided_slice %0 {offsets = [3, 0], sizes = [1, 128], strides = [1, 1]} : vector<16x128xf32> to vector<1x128xf32>
    %21 = vector.broadcast %20 : vector<1x128xf32> to vector<8x128xf32>
    %22 = arith.mulf %19, %21 : vector<8x128xf32>
    %23 = tpu.concatenate %10, %16, %4, %22 in 0 : vector<8x128xf32>, vector<8x128xf32>, vector<8x128xf32>, vector<8x128xf32> -> vector<32x128xf32>
    %c0_8 = arith.constant 0 : index
    %c0_9 = arith.constant 0 : index
    %c0_10 = arith.constant 0 : index
    %24 = vector.load %arg3[%c0_8, %c0_9, %c0_10] : memref<4x8x40xf32, #tpu.memory_space<vmem>>, vector<1x8x40xf32>
    %25 = vector.shape_cast %24 : vector<1x8x40xf32> to vector<8x40xf32>
    %26 = vector.extract_strided_slice %25 {offsets = [0, 0], sizes = [8, 32], strides = [1, 1]} : vector<8x40xf32> to vector<8x32xf32>
    %c0_11 = arith.constant 0 : index
    %c0_12 = arith.constant 0 : index
    %27 = vector.load %arg4[%c0_11, %c0_12] : memref<8x5xf32, #tpu.memory_space<vmem>>, vector<8x1xf32>
    %cst = arith.constant dense<0.000000e+00> : vector<8x128xf32>
    %28 = tpu.matmul %26, %23, %cst {dimension_numbers = #tpu.dot_dimension_numbers<[1], [0], [0], [1], [0, 0, 1, 1], [], []>} : vector<8x32xf32>, vector<32x128xf32>, vector<8x128xf32> -> vector<8x128xf32>
    %29 = vector.broadcast %27 : vector<8x1xf32> to vector<8x128xf32>
    %30 = arith.addf %28, %29 : vector<8x128xf32>
    %31 = vector.extract_strided_slice %30 {offsets = [0, 126], sizes = [8, 2], strides = [1, 1]} : vector<8x128xf32> to vector<8x2xf32>
    %32 = vector.extract_strided_slice %30 {offsets = [0, 0], sizes = [8, 126], strides = [1, 1]} : vector<8x128xf32> to vector<8x126xf32>
    %33 = tpu.concatenate %31, %32 in 1 : vector<8x2xf32>, vector<8x126xf32> -> vector<8x128xf32>
    %34 = vector.extract_strided_slice %0 {offsets = [0, 0], sizes = [1, 128], strides = [1, 1]} : vector<16x128xf32> to vector<1x128xf32>
    %35 = vector.broadcast %34 : vector<1x128xf32> to vector<8x128xf32>
    %36 = arith.mulf %33, %35 : vector<8x128xf32>
    %37 = vector.extract_strided_slice %30 {offsets = [0, 127], sizes = [8, 1], strides = [1, 1]} : vector<8x128xf32> to vector<8x1xf32>
    %38 = vector.extract_strided_slice %30 {offsets = [0, 0], sizes = [8, 127], strides = [1, 1]} : vector<8x128xf32> to vector<8x127xf32>
    %39 = tpu.concatenate %37, %38 in 1 : vector<8x1xf32>, vector<8x127xf32> -> vector<8x128xf32>
    %40 = vector.extract_strided_slice %0 {offsets = [1, 0], sizes = [1, 128], strides = [1, 1]} : vector<16x128xf32> to vector<1x128xf32>
    %41 = vector.broadcast %40 : vector<1x128xf32> to vector<8x128xf32>
    %42 = arith.mulf %39, %41 : vector<8x128xf32>
    %43 = vector.extract_strided_slice %30 {offsets = [0, 1], sizes = [8, 127], strides = [1, 1]} : vector<8x128xf32> to vector<8x127xf32>
    %44 = vector.extract_strided_slice %30 {offsets = [0, 0], sizes = [8, 1], strides = [1, 1]} : vector<8x128xf32> to vector<8x1xf32>
    %45 = tpu.concatenate %43, %44 in 1 : vector<8x127xf32>, vector<8x1xf32> -> vector<8x128xf32>
    %46 = vector.extract_strided_slice %0 {offsets = [3, 0], sizes = [1, 128], strides = [1, 1]} : vector<16x128xf32> to vector<1x128xf32>
    %47 = vector.broadcast %46 : vector<1x128xf32> to vector<8x128xf32>
    %48 = arith.mulf %45, %47 : vector<8x128xf32>
    %49 = vector.extract_strided_slice %30 {offsets = [0, 2], sizes = [8, 126], strides = [1, 1]} : vector<8x128xf32> to vector<8x126xf32>
    %50 = vector.extract_strided_slice %30 {offsets = [0, 0], sizes = [8, 2], strides = [1, 1]} : vector<8x128xf32> to vector<8x2xf32>
    %51 = tpu.concatenate %49, %50 in 1 : vector<8x126xf32>, vector<8x2xf32> -> vector<8x128xf32>
    %52 = vector.extract_strided_slice %0 {offsets = [4, 0], sizes = [1, 128], strides = [1, 1]} : vector<16x128xf32> to vector<1x128xf32>
    %53 = vector.broadcast %52 : vector<1x128xf32> to vector<8x128xf32>
    %54 = arith.mulf %51, %53 : vector<8x128xf32>
    %55 = tpu.concatenate %36, %42, %30, %48, %54 in 0 : vector<8x128xf32>, vector<8x128xf32>, vector<8x128xf32>, vector<8x128xf32>, vector<8x128xf32> -> vector<40x128xf32>
    %c1 = arith.constant 1 : index
    %c0_13 = arith.constant 0 : index
    %c0_14 = arith.constant 0 : index
    %56 = vector.load %arg3[%c1, %c0_13, %c0_14] : memref<4x8x40xf32, #tpu.memory_space<vmem>>, vector<1x8x40xf32>
    %57 = vector.shape_cast %56 : vector<1x8x40xf32> to vector<8x40xf32>
    %c0_15 = arith.constant 0 : index
    %c1_16 = arith.constant 1 : index
    %58 = vector.load %arg4[%c0_15, %c1_16] : memref<8x5xf32, #tpu.memory_space<vmem>>, vector<8x1xf32>
    %cst_17 = arith.constant dense<0.000000e+00> : vector<8x128xf32>
    %59 = tpu.matmul %57, %55, %cst_17 {dimension_numbers = #tpu.dot_dimension_numbers<[1], [0], [0], [1], [0, 0, 1, 1], [], []>} : vector<8x40xf32>, vector<40x128xf32>, vector<8x128xf32> -> vector<8x128xf32>
    %60 = vector.broadcast %58 : vector<8x1xf32> to vector<8x128xf32>
    %61 = arith.addf %59, %60 : vector<8x128xf32>
    %62 = vector.extract_strided_slice %0 {offsets = [5, 0], sizes = [1, 128], strides = [1, 1]} : vector<16x128xf32> to vector<1x128xf32>
    %63 = vector.extract_strided_slice %0 {offsets = [6, 0], sizes = [1, 128], strides = [1, 1]} : vector<16x128xf32> to vector<1x128xf32>
    %64 = arith.mulf %61, %61 : vector<8x128xf32>
    %65 = tpu.concatenate %61, %64 in 0 : vector<8x128xf32>, vector<8x128xf32> -> vector<16x128xf32>
    %cst_18 = arith.constant dense<0.000000e+00> : vector<16x128xf32>
    %66 = tpu.matmul %65, %1, %cst_18 {dimension_numbers = #tpu.dot_dimension_numbers<[1], [0], [0], [1], [0, 0, 1, 1], [], []>} : vector<16x128xf32>, vector<128x128xf32>, vector<16x128xf32> -> vector<16x128xf32>
    %67 = vector.extract_strided_slice %66 {offsets = [0, 0], sizes = [8, 128], strides = [1, 1]} : vector<16x128xf32> to vector<8x128xf32>
    %68 = vector.extract_strided_slice %66 {offsets = [8, 0], sizes = [8, 128], strides = [1, 1]} : vector<16x128xf32> to vector<8x128xf32>
    %69 = arith.mulf %67, %67 : vector<8x128xf32>
    %70 = arith.subf %68, %69 : vector<8x128xf32>
    %71 = arith.subf %61, %67 : vector<8x128xf32>
    %cst_19 = arith.constant 9.99999974E-6 : f32
    %72 = vector.broadcast %cst_19 : f32 to vector<8x128xf32>
    %73 = arith.addf %70, %72 : vector<8x128xf32>
    %74 = math.rsqrt %73 : vector<8x128xf32>
    %75 = arith.mulf %71, %74 : vector<8x128xf32>
    %76 = vector.broadcast %62 : vector<1x128xf32> to vector<8x128xf32>
    %77 = arith.mulf %75, %76 : vector<8x128xf32>
    %78 = vector.broadcast %63 : vector<1x128xf32> to vector<8x128xf32>
    %79 = arith.addf %77, %78 : vector<8x128xf32>
    %cst_20 = arith.constant 2.000000e+01 : f32
    %80 = vector.broadcast %cst_20 : f32 to vector<8x128xf32>
    %81 = arith.minimumf %79, %80 : vector<8x128xf32>
    %82 = math.exp %81 : vector<8x128xf32>
    %cst_21 = arith.constant 1.000000e+00 : f32
    %83 = vector.broadcast %cst_21 : f32 to vector<8x128xf32>
    %84 = arith.addf %83, %82 : vector<8x128xf32>
    %85 = arith.mulf %84, %84 : vector<8x128xf32>
    %cst_22 = arith.constant 1.000000e+00 : f32
    %86 = vector.broadcast %cst_22 : f32 to vector<8x128xf32>
    %87 = arith.subf %85, %86 : vector<8x128xf32>
    %88 = arith.mulf %79, %87 : vector<8x128xf32>
    %cst_23 = arith.constant 1.000000e+00 : f32
    %89 = vector.broadcast %cst_23 : f32 to vector<8x128xf32>
    %90 = arith.addf %85, %89 : vector<8x128xf32>
    %91 = tpu.reciprocal %90 {approx = true} : vector<8x128xf32> -> vector<8x128xf32>
    %92 = arith.mulf %88, %91 : vector<8x128xf32>
    %93 = vector.extract_strided_slice %92 {offsets = [0, 126], sizes = [8, 2], strides = [1, 1]} : vector<8x128xf32> to vector<8x2xf32>
    %94 = vector.extract_strided_slice %92 {offsets = [0, 0], sizes = [8, 126], strides = [1, 1]} : vector<8x128xf32> to vector<8x126xf32>
    %95 = tpu.concatenate %93, %94 in 1 : vector<8x2xf32>, vector<8x126xf32> -> vector<8x128xf32>
    %96 = vector.extract_strided_slice %0 {offsets = [0, 0], sizes = [1, 128], strides = [1, 1]} : vector<16x128xf32> to vector<1x128xf32>
    %97 = vector.broadcast %96 : vector<1x128xf32> to vector<8x128xf32>
    %98 = arith.mulf %95, %97 : vector<8x128xf32>
    %99 = vector.extract_strided_slice %92 {offsets = [0, 127], sizes = [8, 1], strides = [1, 1]} : vector<8x128xf32> to vector<8x1xf32>
    %100 = vector.extract_strided_slice %92 {offsets = [0, 0], sizes = [8, 127], strides = [1, 1]} : vector<8x128xf32> to vector<8x127xf32>
    %101 = tpu.concatenate %99, %100 in 1 : vector<8x1xf32>, vector<8x127xf32> -> vector<8x128xf32>
    %102 = vector.extract_strided_slice %0 {offsets = [1, 0], sizes = [1, 128], strides = [1, 1]} : vector<16x128xf32> to vector<1x128xf32>
    %103 = vector.broadcast %102 : vector<1x128xf32> to vector<8x128xf32>
    %104 = arith.mulf %101, %103 : vector<8x128xf32>
    %105 = vector.extract_strided_slice %92 {offsets = [0, 1], sizes = [8, 127], strides = [1, 1]} : vector<8x128xf32> to vector<8x127xf32>
    %106 = vector.extract_strided_slice %92 {offsets = [0, 0], sizes = [8, 1], strides = [1, 1]} : vector<8x128xf32> to vector<8x1xf32>
    %107 = tpu.concatenate %105, %106 in 1 : vector<8x127xf32>, vector<8x1xf32> -> vector<8x128xf32>
    %108 = vector.extract_strided_slice %0 {offsets = [3, 0], sizes = [1, 128], strides = [1, 1]} : vector<16x128xf32> to vector<1x128xf32>
    %109 = vector.broadcast %108 : vector<1x128xf32> to vector<8x128xf32>
    %110 = arith.mulf %107, %109 : vector<8x128xf32>
    %111 = vector.extract_strided_slice %92 {offsets = [0, 2], sizes = [8, 126], strides = [1, 1]} : vector<8x128xf32> to vector<8x126xf32>
    %112 = vector.extract_strided_slice %92 {offsets = [0, 0], sizes = [8, 2], strides = [1, 1]} : vector<8x128xf32> to vector<8x2xf32>
    %113 = tpu.concatenate %111, %112 in 1 : vector<8x126xf32>, vector<8x2xf32> -> vector<8x128xf32>
    %114 = vector.extract_strided_slice %0 {offsets = [4, 0], sizes = [1, 128], strides = [1, 1]} : vector<16x128xf32> to vector<1x128xf32>
    %115 = vector.broadcast %114 : vector<1x128xf32> to vector<8x128xf32>
    %116 = arith.mulf %113, %115 : vector<8x128xf32>
    %117 = tpu.concatenate %98, %104, %92, %110, %116 in 0 : vector<8x128xf32>, vector<8x128xf32>, vector<8x128xf32>, vector<8x128xf32>, vector<8x128xf32> -> vector<40x128xf32>
    %c2 = arith.constant 2 : index
    %c0_24 = arith.constant 0 : index
    %c0_25 = arith.constant 0 : index
    %118 = vector.load %arg3[%c2, %c0_24, %c0_25] : memref<4x8x40xf32, #tpu.memory_space<vmem>>, vector<1x8x40xf32>
    %119 = vector.shape_cast %118 : vector<1x8x40xf32> to vector<8x40xf32>
    %c0_26 = arith.constant 0 : index
    %c2_27 = arith.constant 2 : index
    %120 = vector.load %arg4[%c0_26, %c2_27] : memref<8x5xf32, #tpu.memory_space<vmem>>, vector<8x1xf32>
    %cst_28 = arith.constant dense<0.000000e+00> : vector<8x128xf32>
    %121 = tpu.matmul %119, %117, %cst_28 {dimension_numbers = #tpu.dot_dimension_numbers<[1], [0], [0], [1], [0, 0, 1, 1], [], []>} : vector<8x40xf32>, vector<40x128xf32>, vector<8x128xf32> -> vector<8x128xf32>
    %122 = vector.broadcast %120 : vector<8x1xf32> to vector<8x128xf32>
    %123 = arith.addf %121, %122 : vector<8x128xf32>
    %124 = vector.extract_strided_slice %0 {offsets = [7, 0], sizes = [1, 128], strides = [1, 1]} : vector<16x128xf32> to vector<1x128xf32>
    %125 = vector.extract_strided_slice %0 {offsets = [8, 0], sizes = [1, 128], strides = [1, 1]} : vector<16x128xf32> to vector<1x128xf32>
    %126 = arith.mulf %123, %123 : vector<8x128xf32>
    %127 = tpu.concatenate %123, %126 in 0 : vector<8x128xf32>, vector<8x128xf32> -> vector<16x128xf32>
    %cst_29 = arith.constant dense<0.000000e+00> : vector<16x128xf32>
    %128 = tpu.matmul %127, %1, %cst_29 {dimension_numbers = #tpu.dot_dimension_numbers<[1], [0], [0], [1], [0, 0, 1, 1], [], []>} : vector<16x128xf32>, vector<128x128xf32>, vector<16x128xf32> -> vector<16x128xf32>
    %129 = vector.extract_strided_slice %128 {offsets = [0, 0], sizes = [8, 128], strides = [1, 1]} : vector<16x128xf32> to vector<8x128xf32>
    %130 = vector.extract_strided_slice %128 {offsets = [8, 0], sizes = [8, 128], strides = [1, 1]} : vector<16x128xf32> to vector<8x128xf32>
    %131 = arith.mulf %129, %129 : vector<8x128xf32>
    %132 = arith.subf %130, %131 : vector<8x128xf32>
    %133 = arith.subf %123, %129 : vector<8x128xf32>
    %cst_30 = arith.constant 9.99999974E-6 : f32
    %134 = vector.broadcast %cst_30 : f32 to vector<8x128xf32>
    %135 = arith.addf %132, %134 : vector<8x128xf32>
    %136 = math.rsqrt %135 : vector<8x128xf32>
    %137 = arith.mulf %133, %136 : vector<8x128xf32>
    %138 = vector.broadcast %124 : vector<1x128xf32> to vector<8x128xf32>
    %139 = arith.mulf %137, %138 : vector<8x128xf32>
    %140 = vector.broadcast %125 : vector<1x128xf32> to vector<8x128xf32>
    %141 = arith.addf %139, %140 : vector<8x128xf32>
    %c0_31 = arith.constant 0 : index
    %c0_32 = arith.constant 0 : index
    %142 = vector.load %arg5[%c0_31, %c0_32] : memref<32x8xf32, #tpu.memory_space<vmem>>, vector<24x8xf32>
    %cst_33 = arith.constant dense<0.000000e+00> : vector<24x128xf32>
    %143 = tpu.matmul %142, %141, %cst_33 {dimension_numbers = #tpu.dot_dimension_numbers<[1], [0], [0], [1], [0, 0, 1, 1], [], []>} : vector<24x8xf32>, vector<8x128xf32>, vector<24x128xf32> -> vector<24x128xf32>
    %c0_34 = arith.constant 0 : index
    %c0_35 = arith.constant 0 : index
    %144 = vector.load %arg8[%c0_34, %c0_35] : memref<128x384xf32, #tpu.memory_space<vmem>>, vector<128x384xf32>
    %cst_36 = arith.constant dense<0.000000e+00> : vector<24x384xf32>
    %145 = tpu.matmul %143, %144, %cst_36 {dimension_numbers = #tpu.dot_dimension_numbers<[1], [0], [0], [1], [0, 0, 1, 1], [], []>} : vector<24x128xf32>, vector<128x384xf32>, vector<24x384xf32> -> vector<24x384xf32>
    %146 = vector.extract_strided_slice %145 {offsets = [0, 0], sizes = [8, 128], strides = [1, 1]} : vector<24x384xf32> to vector<8x128xf32>
    %147 = vector.extract_strided_slice %0 {offsets = [11, 0], sizes = [1, 128], strides = [1, 1]} : vector<16x128xf32> to vector<1x128xf32>
    %148 = vector.broadcast %147 : vector<1x128xf32> to vector<8x128xf32>
    %149 = arith.addf %146, %148 : vector<8x128xf32>
    %150 = vector.extract_strided_slice %145 {offsets = [8, 128], sizes = [8, 128], strides = [1, 1]} : vector<24x384xf32> to vector<8x128xf32>
    %151 = vector.extract_strided_slice %0 {offsets = [12, 0], sizes = [1, 128], strides = [1, 1]} : vector<16x128xf32> to vector<1x128xf32>
    %152 = vector.broadcast %151 : vector<1x128xf32> to vector<8x128xf32>
    %153 = arith.addf %150, %152 : vector<8x128xf32>
    %154 = vector.extract_strided_slice %145 {offsets = [16, 256], sizes = [8, 128], strides = [1, 1]} : vector<24x384xf32> to vector<8x128xf32>
    %155 = vector.extract_strided_slice %0 {offsets = [13, 0], sizes = [1, 128], strides = [1, 1]} : vector<16x128xf32> to vector<1x128xf32>
    %156 = vector.broadcast %155 : vector<1x128xf32> to vector<8x128xf32>
    %157 = arith.addf %154, %156 : vector<8x128xf32>
    %158 = tpu.concatenate %153, %153, %153, %153, %153, %153, %153, %153, %153, %153, %153, %153, %153, %153, %153, %153, %153, %153, %153, %153, %153, %153, %153, %153, %153, %153, %153, %153, %153, %153, %153, %153 in 0 : vector<8x128xf32>, vector<8x128xf32>, vector<8x128xf32>, vector<8x128xf32>, vector<8x128xf32>, vector<8x128xf32>, vector<8x128xf32>, vector<8x128xf32>, vector<8x128xf32>, vector<8x128xf32>, vector<8x128xf32>, vector<8x128xf32>, vector<8x128xf32>, vector<8x128xf32>, vector<8x128xf32>, vector<8x128xf32>, vector<8x128xf32>, vector<8x128xf32>, vector<8x128xf32>, vector<8x128xf32>, vector<8x128xf32>, vector<8x128xf32>, vector<8x128xf32>, vector<8x128xf32>, vector<8x128xf32>, vector<8x128xf32>, vector<8x128xf32>, vector<8x128xf32>, vector<8x128xf32>, vector<8x128xf32>, vector<8x128xf32>, vector<8x128xf32> -> vector<256x128xf32>
    %159 = arith.mulf %158, %2 : vector<256x128xf32>
    %160 = tpu.concatenate %157, %157, %157, %157, %157, %157, %157, %157, %157, %157, %157, %157, %157, %157, %157, %157, %157, %157, %157, %157, %157, %157, %157, %157, %157, %157, %157, %157, %157, %157, %157, %157 in 0 : vector<8x128xf32>, vector<8x128xf32>, vector<8x128xf32>, vector<8x128xf32>, vector<8x128xf32>, vector<8x128xf32>, vector<8x128xf32>, vector<8x128xf32>, vector<8x128xf32>, vector<8x128xf32>, vector<8x128xf32>, vector<8x128xf32>, vector<8x128xf32>, vector<8x128xf32>, vector<8x128xf32>, vector<8x128xf32>, vector<8x128xf32>, vector<8x128xf32>, vector<8x128xf32>, vector<8x128xf32>, vector<8x128xf32>, vector<8x128xf32>, vector<8x128xf32>, vector<8x128xf32>, vector<8x128xf32>, vector<8x128xf32>, vector<8x128xf32>, vector<8x128xf32>, vector<8x128xf32>, vector<8x128xf32>, vector<8x128xf32>, vector<8x128xf32> -> vector<256x128xf32>
    %161 = arith.mulf %160, %2 : vector<256x128xf32>
    %cst_37 = arith.constant dense<0.000000e+00> : vector<8x256xf32>
    %162 = tpu.matmul %149, %159, %cst_37 {dimension_numbers = #tpu.dot_dimension_numbers<[1], [1], [0], [0], [0, 0, 1, 0], [], []>} : vector<8x128xf32>, vector<256x128xf32>, vector<8x256xf32> -> vector<8x256xf32>
    %cst_38 = arith.constant dense<0xFF800000> : vector<8xf32>
    %163 = vector.multi_reduction <maximumf>, %162, %cst_38 [1] : vector<8x256xf32> to vector<8xf32>
    %164 = vector.shape_cast %163 : vector<8xf32> to vector<8x1xf32>
    %165 = vector.broadcast %164 : vector<8x1xf32> to vector<8x256xf32>
    %166 = arith.subf %162, %165 : vector<8x256xf32>
    %167 = math.exp %166 : vector<8x256xf32>
    %cst_39 = arith.constant dense<0.000000e+00> : vector<8x128xf32>
    %168 = tpu.matmul %167, %161, %cst_39 {dimension_numbers = #tpu.dot_dimension_numbers<[1], [0], [0], [1], [0, 0, 1, 1], [], []>} : vector<8x256xf32>, vector<256x128xf32>, vector<8x128xf32> -> vector<8x128xf32>
    %cst_40 = arith.constant dense<0.000000e+00> : vector<8x128xf32>
    %169 = tpu.matmul %167, %2, %cst_40 {dimension_numbers = #tpu.dot_dimension_numbers<[1], [0], [0], [1], [0, 0, 1, 1], [], []>} : vector<8x256xf32>, vector<256x128xf32>, vector<8x128xf32> -> vector<8x128xf32>
    %cst_41 = arith.constant 1.000000e-30 : f32
    %170 = vector.broadcast %cst_41 : f32 to vector<8x128xf32>
    %171 = arith.maximumf %169, %170 : vector<8x128xf32>
    %172 = arith.divf %168, %171 : vector<8x128xf32>
    %c0_42 = arith.constant 0 : index
    %c0_43 = arith.constant 0 : index
    %173 = vector.load %arg9[%c0_42, %c0_43] : memref<128x128xf32, #tpu.memory_space<vmem>>, vector<128x128xf32>
    %cst_44 = arith.constant dense<0.000000e+00> : vector<8x128xf32>
    %174 = tpu.matmul %172, %173, %cst_44 {dimension_numbers = #tpu.dot_dimension_numbers<[1], [0], [0], [1], [0, 0, 1, 1], [], []>} : vector<8x128xf32>, vector<128x128xf32>, vector<8x128xf32> -> vector<8x128xf32>
    %175 = vector.extract_strided_slice %0 {offsets = [14, 0], sizes = [1, 128], strides = [1, 1]} : vector<16x128xf32> to vector<1x128xf32>
    %176 = vector.broadcast %175 : vector<1x128xf32> to vector<8x128xf32>
    %177 = arith.addf %174, %176 : vector<8x128xf32>
    %c24 = arith.constant 24 : index
    %c0_45 = arith.constant 0 : index
    %178 = vector.load %arg5[%c24, %c0_45] : memref<32x8xf32, #tpu.memory_space<vmem>>, vector<8x8xf32>
    %cst_46 = arith.constant dense<0.000000e+00> : vector<8x128xf32>
    %179 = tpu.matmul %178, %177, %cst_46 {dimension_numbers = #tpu.dot_dimension_numbers<[1], [0], [0], [1], [0, 0, 1, 1], [], []>} : vector<8x8xf32>, vector<8x128xf32>, vector<8x128xf32> -> vector<8x128xf32>
    %c0_47 = arith.constant 0 : index
    %c4 = arith.constant 4 : index
    %180 = vector.load %arg4[%c0_47, %c4] : memref<8x5xf32, #tpu.memory_space<vmem>>, vector<8x1xf32>
    %181 = vector.broadcast %180 : vector<8x1xf32> to vector<8x128xf32>
    %182 = arith.addf %179, %181 : vector<8x128xf32>
    %183 = arith.addf %182, %123 : vector<8x128xf32>
    %184 = vector.extract_strided_slice %183 {offsets = [0, 126], sizes = [8, 2], strides = [1, 1]} : vector<8x128xf32> to vector<8x2xf32>
    %185 = vector.extract_strided_slice %183 {offsets = [0, 0], sizes = [8, 126], strides = [1, 1]} : vector<8x128xf32> to vector<8x126xf32>
    %186 = tpu.concatenate %184, %185 in 1 : vector<8x2xf32>, vector<8x126xf32> -> vector<8x128xf32>
    %187 = vector.extract_strided_slice %0 {offsets = [0, 0], sizes = [1, 128], strides = [1, 1]} : vector<16x128xf32> to vector<1x128xf32>
    %188 = vector.broadcast %187 : vector<1x128xf32> to vector<8x128xf32>
    %189 = arith.mulf %186, %188 : vector<8x128xf32>
    %190 = vector.extract_strided_slice %183 {offsets = [0, 127], sizes = [8, 1], strides = [1, 1]} : vector<8x128xf32> to vector<8x1xf32>
    %191 = vector.extract_strided_slice %183 {offsets = [0, 0], sizes = [8, 127], strides = [1, 1]} : vector<8x128xf32> to vector<8x127xf32>
    %192 = tpu.concatenate %190, %191 in 1 : vector<8x1xf32>, vector<8x127xf32> -> vector<8x128xf32>
    %193 = vector.extract_strided_slice %0 {offsets = [1, 0], sizes = [1, 128], strides = [1, 1]} : vector<16x128xf32> to vector<1x128xf32>
    %194 = vector.broadcast %193 : vector<1x128xf32> to vector<8x128xf32>
    %195 = arith.mulf %192, %194 : vector<8x128xf32>
    %196 = vector.extract_strided_slice %183 {offsets = [0, 1], sizes = [8, 127], strides = [1, 1]} : vector<8x128xf32> to vector<8x127xf32>
    %197 = vector.extract_strided_slice %183 {offsets = [0, 0], sizes = [8, 1], strides = [1, 1]} : vector<8x128xf32> to vector<8x1xf32>
    %198 = tpu.concatenate %196, %197 in 1 : vector<8x127xf32>, vector<8x1xf32> -> vector<8x128xf32>
    %199 = vector.extract_strided_slice %0 {offsets = [3, 0], sizes = [1, 128], strides = [1, 1]} : vector<16x128xf32> to vector<1x128xf32>
    %200 = vector.broadcast %199 : vector<1x128xf32> to vector<8x128xf32>
    %201 = arith.mulf %198, %200 : vector<8x128xf32>
    %202 = vector.extract_strided_slice %183 {offsets = [0, 2], sizes = [8, 126], strides = [1, 1]} : vector<8x128xf32> to vector<8x126xf32>
    %203 = vector.extract_strided_slice %183 {offsets = [0, 0], sizes = [8, 2], strides = [1, 1]} : vector<8x128xf32> to vector<8x2xf32>
    %204 = tpu.concatenate %202, %203 in 1 : vector<8x126xf32>, vector<8x2xf32> -> vector<8x128xf32>
    %205 = vector.extract_strided_slice %0 {offsets = [4, 0], sizes = [1, 128], strides = [1, 1]} : vector<16x128xf32> to vector<1x128xf32>
    %206 = vector.broadcast %205 : vector<1x128xf32> to vector<8x128xf32>
    %207 = arith.mulf %204, %206 : vector<8x128xf32>
    %208 = tpu.concatenate %189, %195, %183, %201, %207 in 0 : vector<8x128xf32>, vector<8x128xf32>, vector<8x128xf32>, vector<8x128xf32>, vector<8x128xf32> -> vector<40x128xf32>
    %c3 = arith.constant 3 : index
    %c0_48 = arith.constant 0 : index
    %c0_49 = arith.constant 0 : index
    %209 = vector.load %arg3[%c3, %c0_48, %c0_49] : memref<4x8x40xf32, #tpu.memory_space<vmem>>, vector<1x8x40xf32>
    %210 = vector.shape_cast %209 : vector<1x8x40xf32> to vector<8x40xf32>
    %c0_50 = arith.constant 0 : index
    %c3_51 = arith.constant 3 : index
    %211 = vector.load %arg4[%c0_50, %c3_51] : memref<8x5xf32, #tpu.memory_space<vmem>>, vector<8x1xf32>
    %cst_52 = arith.constant dense<0.000000e+00> : vector<8x128xf32>
    %212 = tpu.matmul %210, %208, %cst_52 {dimension_numbers = #tpu.dot_dimension_numbers<[1], [0], [0], [1], [0, 0, 1, 1], [], []>} : vector<8x40xf32>, vector<40x128xf32>, vector<8x128xf32> -> vector<8x128xf32>
    %213 = vector.broadcast %211 : vector<8x1xf32> to vector<8x128xf32>
    %214 = arith.addf %212, %213 : vector<8x128xf32>
    %215 = vector.extract_strided_slice %0 {offsets = [9, 0], sizes = [1, 128], strides = [1, 1]} : vector<16x128xf32> to vector<1x128xf32>
    %216 = vector.extract_strided_slice %0 {offsets = [10, 0], sizes = [1, 128], strides = [1, 1]} : vector<16x128xf32> to vector<1x128xf32>
    %217 = arith.mulf %214, %214 : vector<8x128xf32>
    %218 = tpu.concatenate %214, %217 in 0 : vector<8x128xf32>, vector<8x128xf32> -> vector<16x128xf32>
    %cst_53 = arith.constant dense<0.000000e+00> : vector<16x128xf32>
    %219 = tpu.matmul %218, %1, %cst_53 {dimension_numbers = #tpu.dot_dimension_numbers<[1], [0], [0], [1], [0, 0, 1, 1], [], []>} : vector<16x128xf32>, vector<128x128xf32>, vector<16x128xf32> -> vector<16x128xf32>
    %220 = vector.extract_strided_slice %219 {offsets = [0, 0], sizes = [8, 128], strides = [1, 1]} : vector<16x128xf32> to vector<8x128xf32>
    %221 = vector.extract_strided_slice %219 {offsets = [8, 0], sizes = [8, 128], strides = [1, 1]} : vector<16x128xf32> to vector<8x128xf32>
    %222 = arith.mulf %220, %220 : vector<8x128xf32>
    %223 = arith.subf %221, %222 : vector<8x128xf32>
    %224 = arith.subf %214, %220 : vector<8x128xf32>
    %cst_54 = arith.constant 9.99999974E-6 : f32
    %225 = vector.broadcast %cst_54 : f32 to vector<8x128xf32>
    %226 = arith.addf %223, %225 : vector<8x128xf32>
    %227 = math.rsqrt %226 : vector<8x128xf32>
    %228 = arith.mulf %224, %227 : vector<8x128xf32>
    %229 = vector.broadcast %215 : vector<1x128xf32> to vector<8x128xf32>
    %230 = arith.mulf %228, %229 : vector<8x128xf32>
    %231 = vector.broadcast %216 : vector<1x128xf32> to vector<8x128xf32>
    %232 = arith.addf %230, %231 : vector<8x128xf32>
    %cst_55 = arith.constant 2.000000e+01 : f32
    %233 = vector.broadcast %cst_55 : f32 to vector<8x128xf32>
    %234 = arith.minimumf %232, %233 : vector<8x128xf32>
    %235 = math.exp %234 : vector<8x128xf32>
    %cst_56 = arith.constant 1.000000e+00 : f32
    %236 = vector.broadcast %cst_56 : f32 to vector<8x128xf32>
    %237 = arith.addf %236, %235 : vector<8x128xf32>
    %238 = arith.mulf %237, %237 : vector<8x128xf32>
    %cst_57 = arith.constant 1.000000e+00 : f32
    %239 = vector.broadcast %cst_57 : f32 to vector<8x128xf32>
    %240 = arith.subf %238, %239 : vector<8x128xf32>
    %241 = arith.mulf %232, %240 : vector<8x128xf32>
    %cst_58 = arith.constant 1.000000e+00 : f32
    %242 = vector.broadcast %cst_58 : f32 to vector<8x128xf32>
    %243 = arith.addf %238, %242 : vector<8x128xf32>
    %244 = tpu.reciprocal %243 {approx = true} : vector<8x128xf32> -> vector<8x128xf32>
    %245 = arith.mulf %241, %244 : vector<8x128xf32>
    %c0_59 = arith.constant 0 : index
    %c0_60 = arith.constant 0 : index
    %c0_61 = arith.constant 0 : index
    %246 = vector.load %arg2[%c0_59, %c0_60, %c0_61] : memref<1x8x128xf32, #tpu.memory_space<vmem>>, vector<1x8x128xf32>
    %247 = vector.shape_cast %246 : vector<1x8x128xf32> to vector<8x128xf32>
    %248 = arith.addf %245, %247 : vector<8x128xf32>
    %c0_62 = arith.constant 0 : index
    %c0_63 = arith.constant 0 : index
    %c0_64 = arith.constant 0 : index
    %249 = vector.load %arg11[%c0_62, %c0_63, %c0_64] : memref<1x8x128xf32, #tpu.memory_space<vmem>>, vector<1x8x128xf32>
    %250 = vector.shape_cast %249 : vector<1x8x128xf32> to vector<8x128xf32>
    %251 = vector.shape_cast %248 : vector<8x128xf32> to vector<1x8x128xf32>
    tpu.vector_store %arg11[%c0_62, %c0_63, %c0_64], %251 {strides = array<i32>} : memref<1x8x128xf32, #tpu.memory_space<vmem>>, vector<1x8x128xf32>,
    return
  }
  func.func @transform_0(%arg0: i32) -> (i32, i32, i32) {
    %c0_i32 = arith.constant 0 : i32
    %c0_i32_0 = arith.constant 0 : i32
    %c0_i32_1 = arith.constant 0 : i32
    return %arg0, %c0_i32, %c0_i32_0 : i32, i32, i32
  }
  func.func @transform_1(%arg0: i32) -> (i32, i32, i32) {
    %c0_i32 = arith.constant 0 : i32
    %c0_i32_0 = arith.constant 0 : i32
    %c0_i32_1 = arith.constant 0 : i32
    return %arg0, %c0_i32, %c0_i32_0 : i32, i32, i32
  }
  func.func @transform_2(%arg0: i32) -> (i32, i32, i32) {
    %c0_i32 = arith.constant 0 : i32
    %c0_i32_0 = arith.constant 0 : i32
    %c0_i32_1 = arith.constant 0 : i32
    %c0_i32_2 = arith.constant 0 : i32
    return %c0_i32, %c0_i32_0, %c0_i32_1 : i32, i32, i32
  }
  func.func @transform_3(%arg0: i32) -> (i32, i32) {
    %c0_i32 = arith.constant 0 : i32
    %c0_i32_0 = arith.constant 0 : i32
    %c0_i32_1 = arith.constant 0 : i32
    return %c0_i32, %c0_i32_0 : i32, i32
  }
  func.func @transform_4(%arg0: i32) -> (i32, i32) {
    %c0_i32 = arith.constant 0 : i32
    %c0_i32_0 = arith.constant 0 : i32
    %c0_i32_1 = arith.constant 0 : i32
    return %c0_i32, %c0_i32_0 : i32, i32
  }
  func.func @transform_5(%arg0: i32) -> (i32, i32) {
    %c0_i32 = arith.constant 0 : i32
    %c0_i32_0 = arith.constant 0 : i32
    %c0_i32_1 = arith.constant 0 : i32
    return %c0_i32, %c0_i32_0 : i32, i32
  }
  func.func @transform_6(%arg0: i32) -> (i32, i32) {
    %c0_i32 = arith.constant 0 : i32
    %c0_i32_0 = arith.constant 0 : i32
    %c0_i32_1 = arith.constant 0 : i32
    return %c0_i32, %c0_i32_0 : i32, i32
  }
  func.func @transform_7(%arg0: i32) -> (i32, i32) {
    %c0_i32 = arith.constant 0 : i32
    %c0_i32_0 = arith.constant 0 : i32
    %c0_i32_1 = arith.constant 0 : i32
    return %c0_i32, %c0_i32_0 : i32, i32
  }
  func.func @transform_8(%arg0: i32) -> (i32, i32) {
    %c0_i32 = arith.constant 0 : i32
    %c0_i32_0 = arith.constant 0 : i32
    %c0_i32_1 = arith.constant 0 : i32
    return %c0_i32, %c0_i32_0 : i32, i32
  }
  func.func @transform_9(%arg0: i32) -> (i32, i32) {
    %c0_i32 = arith.constant 0 : i32
    %c0_i32_0 = arith.constant 0 : i32
    %c0_i32_1 = arith.constant 0 : i32
    return %c0_i32, %c0_i32_0 : i32, i32
  }
  func.func @transform_10(%arg0: i32) -> (i32, i32, i32) {
    %c0_i32 = arith.constant 0 : i32
    %c0_i32_0 = arith.constant 0 : i32
    %c0_i32_1 = arith.constant 0 : i32
    return %arg0, %c0_i32, %c0_i32_0 : i32, i32, i32
  }
}

</mosaic_0001>

<llo_original>
// kernel: upsampling_block_forward.1
$region0: #{upsampling_block_forward.1}
  #allocation0 [shape = 'u32[]', space=smem, size = 0x4, offset = 0x4, fixed_abs, tag = 'smem constant byte address 0x4 - core index']
  #allocation1 [shape = 'u32[144,128]{1,0:T(1,128)}', space=vmem, size = 0x12000, scoped, tag = 'internal scratch']
  %s0 = inlined_call_operand.vmem [shape: f32[2,8,128], index: 0, kind: input, shape index: {}]
  %s1 = inlined_call_operand.vmem [shape: f32[2,8,128], index: 1, kind: input, shape index: {}]
  %s2 = inlined_call_operand.vmem [shape: f32[4,8,40], index: 2, kind: input, shape index: {}]
  %s3 = inlined_call_operand.vmem [shape: f32[8,5], index: 3, kind: input, shape index: {}]
  %s4 = inlined_call_operand.vmem [shape: f32[32,8], index: 4, kind: input, shape index: {}]
  %s5 = inlined_call_operand.vmem [shape: f32[16,128], index: 5, kind: input, shape index: {}]
  %s6 = inlined_call_operand.vmem [shape: f32[128,128], index: 6, kind: input, shape index: {}]
  %s7 = inlined_call_operand.vmem [shape: f32[128,384], index: 7, kind: input, shape index: {}]
  %s8 = inlined_call_operand.vmem [shape: f32[128,128], index: 8, kind: input, shape index: {}]
  %s9 = inlined_call_operand.vmem [shape: f32[256,128], index: 9, kind: input, shape index: {}]
  %s10 = inlined_call_operand.vmem [shape: f32[2,8,128], index: 10, kind: output, shape index: {}]
  %s11 = sld [smem:[#allocation0]]
  $region73: #{upsampling_block_forward.1} parent=0
    _
  %s13 = ssub.s32 1, %s11
  %s14 = scalar_select 0, %s13, %s11
  loop: start=0, step=1, limit=4
  $region2: #{upsampling_block_forward.1} parent=0 // loop_pre_header
    _
  $region3: #{upsampling_block_forward.1} parent=0 // loop_header
    %s16 = sphi 0, %s20
    %p17 = scmp.ge.s32.totalorder %s16, 4
    %s26 = sphi 0, %s28
    %s29 = sphi 0, %s26
    %s30 = sphi 0, %s29
    %s46 = sphi 0, %s30
    %s52 = sphi 0, %s54
    %s55 = sphi 0, %s52
    %s56 = sphi 0, %s55
    %s72 = sphi 0, %s56
    %s76 = sphi 0, %s76
    %s78 = sphi 0, %s76
    %s79 = sphi 0, %s78
    %s93 = sphi 0, %s79
    %s97 = sphi 0, %s97
    %s99 = sphi 0, %s97
    %s100 = sphi 0, %s99
    %s114 = sphi 0, %s100
    %s118 = sphi 0, %s118
    %s120 = sphi 0, %s118
    %s121 = sphi 0, %s120
    %s135 = sphi 0, %s121
    %s139 = sphi 0, %s139
    %s141 = sphi 0, %s139
    %s142 = sphi 0, %s141
    %s156 = sphi 0, %s142
    %s160 = sphi 0, %s160
    %s162 = sphi 0, %s160
    %s163 = sphi 0, %s162
    %s177 = sphi 0, %s163
    %s181 = sphi 0, %s181
    %s183 = sphi 0, %s181
    %s184 = sphi 0, %s183
    %s198 = sphi 0, %s184
    %s202 = sphi 0, %s202
    %s204 = sphi 0, %s202
    %s205 = sphi 0, %s204
    %s219 = sphi 0, %s205
    %s223 = sphi 0, %s223
    %s225 = sphi 0, %s223
    %s226 = sphi 0, %s225
    %s240 = sphi 0, %s226
    %s246 = sphi 0, %s248
    %s249 = sphi 0, %s246
    %s250 = sphi 0, %s249
    %s266 = sphi 0, %s250
  $region4: #{upsampling_block_forward.1} parent=0 // loop_header_branch
    %19 = sbr.rel (%p17) target = $region8
  $region5: #{upsampling_block_forward.1} parent=0 // loop_body
    %s21 = ssub.s32 %s16, 1
    %s22 = ssub.s32 %s16, 2
    %s23 = sadd.s32 %s16, 1
    %s24 = ssub.s32 %s16, %s23
    %p25 = scmp.eq.s32.totalorder %s24, 0
    %s27 = sadd.s32 %s26, 1
    %s28 = scalar_select %p25, %s26, %s27
    %p31 = pneg %p25
    %p32 = scmp.eq.s32.totalorder %s16, 1
    %p33 = por %p31, %p32
    %p34 = scmp.ne.s32.totalorder %s26, %s29
    %p35 = scmp.eq.s32.totalorder %s16, 0
    %p36 = por %p34, %p35
    %p37 = scmp.ne.s32.totalorder %s26, %s29
    %p38 = scmp.eq.s32.totalorder %s21, 1
    %p39 = por %p37, %p38
    %p40 = scmp.ne.s32.totalorder %s29, %s30
    %p41 = scmp.eq.s32.totalorder %s21, 0
    %p42 = por %p40, %p41
    %p43 = scmp.ne.s32.totalorder %s29, %s30
    %p44 = scmp.eq.s32.totalorder %s22, 1
    %p45 = por %p43, %p44
    %p47 = scmp.ne.s32.totalorder %s30, %s46
    %p48 = scmp.eq.s32.totalorder %s22, 0
    %p49 = por %p47, %p48
    %s50 = ssub.s32 %s16, %s23
    %p51 = scmp.eq.s32.totalorder %s50, 0
    %s53 = sadd.s32 %s52, 1
    %s54 = scalar_select %p51, %s52, %s53
    %p57 = pneg %p51
    %p58 = scmp.eq.s32.totalorder %s16, 1
    %p59 = por %p57, %p58
    %p60 = scmp.ne.s32.totalorder %s52, %s55
    %p61 = scmp.eq.s32.totalorder %s16, 0
    %p62 = por %p60, %p61
    %p63 = scmp.ne.s32.totalorder %s52, %s55
    %p64 = scmp.eq.s32.totalorder %s21, 1
    %p65 = por %p63, %p64
    %p66 = scmp.ne.s32.totalorder %s55, %s56
    %p67 = scmp.eq.s32.totalorder %s21, 0
    %p68 = por %p66, %p67
    %p69 = scmp.ne.s32.totalorder %s55, %s56
    %p70 = scmp.eq.s32.totalorder %s22, 1
    %p71 = por %p69, %p70
    %p73 = scmp.ne.s32.totalorder %s56, %s72
    %p74 = scmp.eq.s32.totalorder %s22, 0
    %p75 = por %p73, %p74
    %s77 = sadd.s32 %s76, 1
    %p80 = scmp.eq.s32.totalorder %s16, 1
    %p81 = scmp.ne.s32.totalorder %s76, %s78
    %p82 = scmp.eq.s32.totalorder %s16, 0
    %p83 = por %p81, %p82
    %p84 = scmp.ne.s32.totalorder %s76, %s78
    %p85 = scmp.eq.s32.totalorder %s21, 1
    %p86 = por %p84, %p85
    %p87 = scmp.ne.s32.totalorder %s78, %s79
    %p88 = scmp.eq.s32.totalorder %s21, 0
    %p89 = por %p87, %p88
    %p90 = scmp.ne.s32.totalorder %s78, %s79
    %p91 = scmp.eq.s32.totalorder %s22, 1
    %p92 = por %p90, %p91
    %p94 = scmp.ne.s32.totalorder %s79, %s93
    %p95 = scmp.eq.s32.totalorder %s22, 0
    %p96 = por %p94, %p95
    %s98 = sadd.s32 %s97, 1
    %p101 = scmp.eq.s32.totalorder %s16, 1
    %p102 = scmp.ne.s32.totalorder %s97, %s99
    %p103 = scmp.eq.s32.totalorder %s16, 0
    %p104 = por %p102, %p103
    %p105 = scmp.ne.s32.totalorder %s97, %s99
    %p106 = scmp.eq.s32.totalorder %s21, 1
    %p107 = por %p105, %p106
    %p108 = scmp.ne.s32.totalorder %s99, %s100
    %p109 = scmp.eq.s32.totalorder %s21, 0
    %p110 = por %p108, %p109
    %p111 = scmp.ne.s32.totalorder %s99, %s100
    %p112 = scmp.eq.s32.totalorder %s22, 1
    %p113 = por %p111, %p112
    %p115 = scmp.ne.s32.totalorder %s100, %s114
    %p116 = scmp.eq.s32.totalorder %s22, 0
    %p117 = por %p115, %p116
    %s119 = sadd.s32 %s118, 1
    %p122 = scmp.eq.s32.totalorder %s16, 1
    %p123 = scmp.ne.s32.totalorder %s118, %s120
    %p124 = scmp.eq.s32.totalorder %s16, 0
    %p125 = por %p123, %p124
    %p126 = scmp.ne.s32.totalorder %s118, %s120
    %p127 = scmp.eq.s32.totalorder %s21, 1
    %p128 = por %p126, %p127
    %p129 = scmp.ne.s32.totalorder %s120, %s121
    %p130 = scmp.eq.s32.totalorder %s21, 0
    %p131 = por %p129, %p130
    %p132 = scmp.ne.s32.totalorder %s120, %s121
    %p133 = scmp.eq.s32.totalorder %s22, 1
    %p134 = por %p132, %p133
    %p136 = scmp.ne.s32.totalorder %s121, %s135
    %p137 = scmp.eq.s32.totalorder %s22, 0
    %p138 = por %p136, %p137
    %s140 = sadd.s32 %s139, 1
    %p143 = scmp.eq.s32.totalorder %s16, 1
    %p144 = scmp.ne.s32.totalorder %s139, %s141
    %p145 = scmp.eq.s32.totalorder %s16, 0
    %p146 = por %p144, %p145
    %p147 = scmp.ne.s32.totalorder %s139, %s141
    %p148 = scmp.eq.s32.totalorder %s21, 1
    %p149 = por %p147, %p148
    %p150 = scmp.ne.s32.totalorder %s141, %s142
    %p151 = scmp.eq.s32.totalorder %s21, 0
    %p152 = por %p150, %p151
    %p153 = scmp.ne.s32.totalorder %s141, %s142
    %p154 = scmp.eq.s32.totalorder %s22, 1
    %p155 = por %p153, %p154
    %p157 = scmp.ne.s32.totalorder %s142, %s156
    %p158 = scmp.eq.s32.totalorder %s22, 0
    %p159 = por %p157, %p158
    %s161 = sadd.s32 %s160, 1
    %p164 = scmp.eq.s32.totalorder %s16, 1
    %p165 = scmp.ne.s32.totalorder %s160, %s162
    %p166 = scmp.eq.s32.totalorder %s16, 0
    %p167 = por %p165, %p166
    %p168 = scmp.ne.s32.totalorder %s160, %s162
    %p169 = scmp.eq.s32.totalorder %s21, 1
    %p170 = por %p168, %p169
    %p171 = scmp.ne.s32.totalorder %s162, %s163
    %p172 = scmp.eq.s32.totalorder %s21, 0
    %p173 = por %p171, %p172
    %p174 = scmp.ne.s32.totalorder %s162, %s163
    %p175 = scmp.eq.s32.totalorder %s22, 1
    %p176 = por %p174, %p175
    %p178 = scmp.ne.s32.totalorder %s163, %s177
    %p179 = scmp.eq.s32.totalorder %s22, 0
    %p180 = por %p178, %p179
    %s182 = sadd.s32 %s181, 1
    %p185 = scmp.eq.s32.totalorder %s16, 1
    %p186 = scmp.ne.s32.totalorder %s181, %s183
    %p187 = scmp.eq.s32.totalorder %s16, 0
    %p188 = por %p186, %p187
    %p189 = scmp.ne.s32.totalorder %s181, %s183
    %p190 = scmp.eq.s32.totalorder %s21, 1
    %p191 = por %p189, %p190
    %p192 = scmp.ne.s32.totalorder %s183, %s184
    %p193 = scmp.eq.s32.totalorder %s21, 0
    %p194 = por %p192, %p193
    %p195 = scmp.ne.s32.totalorder %s183, %s184
    %p196 = scmp.eq.s32.totalorder %s22, 1
    %p197 = por %p195, %p196
    %p199 = scmp.ne.s32.totalorder %s184, %s198
    %p200 = scmp.eq.s32.totalorder %s22, 0
    %p201 = por %p199, %p200
    %s203 = sadd.s32 %s202, 1
    %p206 = scmp.eq.s32.totalorder %s16, 1
    %p207 = scmp.ne.s32.totalorder %s202, %s204
    %p208 = scmp.eq.s32.totalorder %s16, 0
    %p209 = por %p207, %p208
    %p210 = scmp.ne.s32.totalorder %s202, %s204
    %p211 = scmp.eq.s32.totalorder %s21, 1
    %p212 = por %p210, %p211
    %p213 = scmp.ne.s32.totalorder %s204, %s205
    %p214 = scmp.eq.s32.totalorder %s21, 0
    %p215 = por %p213, %p214
    %p216 = scmp.ne.s32.totalorder %s204, %s205
    %p217 = scmp.eq.s32.totalorder %s22, 1
    %p218 = por %p216, %p217
    %p220 = scmp.ne.s32.totalorder %s205, %s219
    %p221 = scmp.eq.s32.totalorder %s22, 0
    %p222 = por %p220, %p221
    %s224 = sadd.s32 %s223, 1
    %p227 = scmp.eq.s32.totalorder %s16, 1
    %p228 = scmp.ne.s32.totalorder %s223, %s225
    %p229 = scmp.eq.s32.totalorder %s16, 0
    %p230 = por %p228, %p229
    %p231 = scmp.ne.s32.totalorder %s223, %s225
    %p232 = scmp.eq.s32.totalorder %s21, 1
    %p233 = por %p231, %p232
    %p234 = scmp.ne.s32.totalorder %s225, %s226
    %p235 = scmp.eq.s32.totalorder %s21, 0
    %p236 = por %p234, %p235
    %p237 = scmp.ne.s32.totalorder %s225, %s226
    %p238 = scmp.eq.s32.totalorder %s22, 1
    %p239 = por %p237, %p238
    %p241 = scmp.ne.s32.totalorder %s226, %s240
    %p242 = scmp.eq.s32.totalorder %s22, 0
    %p243 = por %p241, %p242
    %s244 = ssub.s32 %s16, %s23
    %p245 = scmp.eq.s32.totalorder %s244, 0
    %s247 = sadd.s32 %s246, 1
    %s248 = scalar_select %p245, %s246, %s247
    %p251 = pneg %p245
    %p252 = scmp.eq.s32.totalorder %s16, 1
    %p253 = por %p251, %p252
    %p254 = scmp.ne.s32.totalorder %s246, %s249
    %p255 = scmp.eq.s32.totalorder %s16, 0
    %p256 = por %p254, %p255
    %p257 = scmp.ne.s32.totalorder %s246, %s249
    %p258 = scmp.eq.s32.totalorder %s21, 1
    %p259 = por %p257, %p258
    %p260 = scmp.ne.s32.totalorder %s249, %s250
    %p261 = scmp.eq.s32.totalorder %s21, 0
    %p262 = por %p260, %p261
    %p263 = scmp.ne.s32.totalorder %s249, %s250
    %p264 = scmp.eq.s32.totalorder %s22, 1
    %p265 = por %p263, %p264
    %p267 = scmp.ne.s32.totalorder %s250, %s266
    %p268 = scmp.eq.s32.totalorder %s22, 0
    %p269 = por %p267, %p268
    %p270 = scmp.le.s32.totalorder 1, %s16
    %p271 = scmp.lt.s32.totalorder %s16, 3
    %p272 = pnand %p270, %p271
    %p273 = pneg %p272
    // Predicated region
    $region9: #{upsampling_block_forward.1} parent=5 // pred_check
      _
    $region10: #{upsampling_block_forward.1} parent=5 // pred_check_branch
      %275 = sbr.rel (%p272) target = $region12
    $region11: #{upsampling_block_forward.1} parent=5 // pred_region
      %s276 = ssub.s32 %s16, 1
      // Predicated region
      $region13: #{upsampling_block_forward.1} parent=11 // pred_check
        %p277 = pneg %p89
      $region14: #{upsampling_block_forward.1} parent=11 // pred_check_branch
        %279 = sbr.rel (%p277) target = $region16
      $region15: #{upsampling_block_forward.1} parent=11 // pred_region
        _
      $region16: #{upsampling_block_forward.1} parent=11 // pred_fallthru
        _
      // Predicated region
      $region17: #{upsampling_block_forward.1} parent=11 // pred_check
        %p280 = pneg %p110
      $region18: #{upsampling_block_forward.1} parent=11 // pred_check_branch
        %282 = sbr.rel (%p280) target = $region20
      $region19: #{upsampling_block_forward.1} parent=11 // pred_region
        _
      $region20: #{upsampling_block_forward.1} parent=11 // pred_fallthru
        _
      // Predicated region
      $region21: #{upsampling_block_forward.1} parent=11 // pred_check
        %p283 = pneg %p131
      $region22: #{upsampling_block_forward.1} parent=11 // pred_check_branch
        %285 = sbr.rel (%p283) target = $region24
      $region23: #{upsampling_block_forward.1} parent=11 // pred_region
        _
      $region24: #{upsampling_block_forward.1} parent=11 // pred_fallthru
        _
      // Predicated region
      $region25: #{upsampling_block_forward.1} parent=11 // pred_check
        %p286 = pneg %p152
      $region26: #{upsampling_block_forward.1} parent=11 // pred_check_branch
        %288 = sbr.rel (%p286) target = $region28
      $region27: #{upsampling_block_forward.1} parent=11 // pred_region
        _
      $region28: #{upsampling_block_forward.1} parent=11 // pred_fallthru
        _
      // Predicated region
      $region29: #{upsampling_block_forward.1} parent=11 // pred_check
        %p289 = pneg %p173
      $region30: #{upsampling_block_forward.1} parent=11 // pred_check_branch
        %291 = sbr.rel (%p289) target = $region32
      $region31: #{upsampling_block_forward.1} parent=11 // pred_region
        _
      $region32: #{upsampling_block_forward.1} parent=11 // pred_fallthru
        _
      // Predicated region
      $region33: #{upsampling_block_forward.1} parent=11 // pred_check
        %p292 = pneg %p194
      $region34: #{upsampling_block_forward.1} parent=11 // pred_check_branch
        %294 = sbr.rel (%p292) target = $region36
      $region35: #{upsampling_block_forward.1} parent=11 // pred_region
        _
      $region36: #{upsampling_block_forward.1} parent=11 // pred_fallthru
        _
      // Predicated region
      $region37: #{upsampling_block_forward.1} parent=11 // pred_check
        %p295 = pneg %p215
      $region38: #{upsampling_block_forward.1} parent=11 // pred_check_branch
        %297 = sbr.rel (%p295) target = $region40
      $region39: #{upsampling_block_forward.1} parent=11 // pred_region
        _
      $region40: #{upsampling_block_forward.1} parent=11 // pred_fallthru
        _
      // Predicated region
      $region41: #{upsampling_block_forward.1} parent=11 // pred_check
        %p298 = pneg %p236
      $region42: #{upsampling_block_forward.1} parent=11 // pred_check_branch
        %300 = sbr.rel (%p298) target = $region44
      $region43: #{upsampling_block_forward.1} parent=11 // pred_region
        _
      $region44: #{upsampling_block_forward.1} parent=11 // pred_fallthru
        _
    $region12: #{upsampling_block_forward.1} parent=5 // pred_fallthru
      _
    %p301 = scmp.lt.s32.totalorder %s16, 2
    // Predicated region
    $region45: #{upsampling_block_forward.1} parent=5 // pred_check
      %p302 = pneg %p301
    $region46: #{upsampling_block_forward.1} parent=5 // pred_check_branch
      %304 = sbr.rel (%p302) target = $region48
    $region47: #{upsampling_block_forward.1} parent=5 // pred_region
      // Predicated region
      $region49: #{upsampling_block_forward.1} parent=47 // pred_check
        %p305 = pneg %p36
      $region50: #{upsampling_block_forward.1} parent=47 // pred_check_branch
        %307 = sbr.rel (%p305) target = $region52
      $region51: #{upsampling_block_forward.1} parent=47 // pred_region
        %p308 = scmp.lt.s32.totalorder %s16, 1
        %s309 = scalar_select %p308, %s16, 1
        %s310 = smul.addr %s309, 8
        %s311 = scalar_lea.vmem %s0, %s310
      $region52: #{upsampling_block_forward.1} parent=47 // pred_fallthru
        _
      // Predicated region
      $region53: #{upsampling_block_forward.1} parent=47 // pred_check
        %p312 = pneg %p62
      $region54: #{upsampling_block_forward.1} parent=47 // pred_check_branch
        %314 = sbr.rel (%p312) target = $region56
      $region55: #{upsampling_block_forward.1} parent=47 // pred_region
        %p315 = scmp.lt.s32.totalorder %s16, 1
        %s316 = scalar_select %p315, %s16, 1
        %s317 = smul.addr %s316, 8
        %s318 = scalar_lea.vmem %s1, %s317
      $region56: #{upsampling_block_forward.1} parent=47 // pred_fallthru
        _
    $region48: #{upsampling_block_forward.1} parent=5 // pred_fallthru
      _
    %p319 = scmp.le.s32.totalorder 1, %s16
    %p320 = scmp.lt.s32.totalorder %s16, 3
    %p321 = pnand %p319, %p320
    %p322 = pneg %p321
    // Predicated region
    $region57: #{upsampling_block_forward.1} parent=5 // pred_check
      _
    $region58: #{upsampling_block_forward.1} parent=5 // pred_check_branch
      %324 = sbr.rel (%p321) target = $region60
    $region59: #{upsampling_block_forward.1} parent=5 // pred_region
      %s325 = ssub.s32 %s16, 1
      %p326 = scmp.lt.s32.totalorder %s21, 1
      %s327 = scalar_select %p326, %s21, 1
      %s328 = smul.addr %s327, 8
      %s329 = scalar_lea.vmem %s0, %s328
      %p330 = pneg %p42
      %p331 = pneg %p39
      %p332 = scmp.lt.s32.totalorder %s21, 1
      %s333 = scalar_select %p332, %s21, 1
      %s334 = smul.addr %s333, 8
      %s335 = scalar_lea.vmem %s1, %s334
      %p336 = pneg %p68
      %p337 = pneg %p65
      %p338 = pneg %p89
      %p339 = pneg %p86
      %p340 = pneg %p110
      %p341 = pneg %p107
      %p342 = pneg %p131
      %p343 = pneg %p128
      %p344 = pneg %p152
      %p345 = pneg %p149
      %p346 = pneg %p173
      %p347 = pneg %p170
      %p348 = pneg %p194
      %p349 = pneg %p191
      %p350 = pneg %p215
      %p351 = pneg %p212
      %p352 = pneg %p236
      %p353 = pneg %p233
      %p354 = pneg %p262
      %p355 = pneg %p259
      %p356 = scmp.lt.s32.totalorder %s21, 1
      %s357 = scalar_select %p356, %s21, 1
      %s358 = smul.addr %s357, 8
      %s359 = scalar_lea.vmem %s10, %s358
      %p360 = scmp.lt.s32.totalorder %s21, 1
      %s361 = scalar_select %p360, %s21, 1
      %s362 = smul.addr %s361, 8
      %s363 = scalar_lea.vmem %s0, %s362
      %p364 = scmp.lt.s32.totalorder %s21, 1
      %s365 = scalar_select %p364, %s21, 1
      %s366 = smul.addr %s365, 8
      %s367 = scalar_lea.vmem %s1, %s366
      %p368 = scmp.lt.s32.totalorder %s21, 1
      %s369 = scalar_select %p368, %s21, 1
      %s370 = smul.addr %s369, 8
      %s371 = scalar_lea.vmem %s10, %s370
      %v372 = vld [vmem:[%s5] sm:$0xff]
      %v373 = vld [vmem:[%s5 + $0x8] sm:$0xff]
      %v374 = vld [vmem:[%s6] sm:$0xff]
      %v375 = vld [vmem:[%s6 + $0x8] sm:$0xff]
      %v376 = vld [vmem:[%s6 + $0x10] sm:$0xff]
      %v377 = vld [vmem:[%s6 + $0x18] sm:$0xff]
      %v378 = vld [vmem:[%s6 + $0x20] sm:$0xff]
      %v379 = vld [vmem:[%s6 + $0x28] sm:$0xff]
      %v380 = vld [vmem:[%s6 + $0x30] sm:$0xff]
      %v381 = vld [vmem:[%s6 + $0x38] sm:$0xff]
      %v382 = vld [vmem:[%s6 + $0x40] sm:$0xff]
      %v383 = vld [vmem:[%s6 + $0x48] sm:$0xff]
      %v384 = vld [vmem:[%s6 + $0x50] sm:$0xff]
      %v385 = vld [vmem:[%s6 + $0x58] sm:$0xff]
      %v386 = vld [vmem:[%s6 + $0x60] sm:$0xff]
      %v387 = vld [vmem:[%s6 + $0x68] sm:$0xff]
      %v388 = vld [vmem:[%s6 + $0x70] sm:$0xff]
      %v389 = vld [vmem:[%s6 + $0x78] sm:$0xff]
      %v390 = vld [vmem:[%s9] sm:$0xff]
      %v391 = vld [vmem:[%s9 + $0x8] sm:$0xff]
      %v392 = vld [vmem:[%s9 + $0x10] sm:$0xff]
      %v393 = vld [vmem:[%s9 + $0x18] sm:$0xff]
      %v394 = vld [vmem:[%s9 + $0x20] sm:$0xff]
      %v395 = vld [vmem:[%s9 + $0x28] sm:$0xff]
      %v396 = vld [vmem:[%s9 + $0x30] sm:$0xff]
      %v397 = vld [vmem:[%s9 + $0x38] sm:$0xff]
      %v398 = vld [vmem:[%s9 + $0x40] sm:$0xff]
      %v399 = vld [vmem:[%s9 + $0x48] sm:$0xff]
      %v400 = vld [vmem:[%s9 + $0x50] sm:$0xff]
      %v401 = vld [vmem:[%s9 + $0x58] sm:$0xff]
      %v402 = vld [vmem:[%s9 + $0x60] sm:$0xff]
      %v403 = vld [vmem:[%s9 + $0x68] sm:$0xff]
      %v404 = vld [vmem:[%s9 + $0x70] sm:$0xff]
      %v405 = vld [vmem:[%s9 + $0x78] sm:$0xff]
      %v406 = vld [vmem:[%s9 + $0x80] sm:$0xff]
      %v407 = vld [vmem:[%s9 + $0x88] sm:$0xff]
      %v408 = vld [vmem:[%s9 + $0x90] sm:$0xff]
      %v409 = vld [vmem:[%s9 + $0x98] sm:$0xff]
      %v410 = vld [vmem:[%s9 + $0xa0] sm:$0xff]
      %v411 = vld [vmem:[%s9 + $0xa8] sm:$0xff]
      %v412 = vld [vmem:[%s9 + $0xb0] sm:$0xff]
      %v413 = vld [vmem:[%s9 + $0xb8] sm:$0xff]
      %v414 = vld [vmem:[%s9 + $0xc0] sm:$0xff]
      %v415 = vld [vmem:[%s9 + $0xc8] sm:$0xff]
      %v416 = vld [vmem:[%s9 + $0xd0] sm:$0xff]
      %v417 = vld [vmem:[%s9 + $0xd8] sm:$0xff]
      %v418 = vld [vmem:[%s9 + $0xe0] sm:$0xff]
      %v419 = vld [vmem:[%s9 + $0xe8] sm:$0xff]
      %v420 = vld [vmem:[%s9 + $0xf0] sm:$0xff]
      %v421 = vld [vmem:[%s9 + $0xf8] sm:$0xff]
      %v422 = vld [vmem:[%s363] sm:$0xff]
      %424 = vrot.lane.b32.xlu0 %v422, 2
      %v425 = vpop.permute.xlu0 %424
      %v427 = vlaneseq
      %v428 = vshrl.u32 %v427, 7
      %v429 = vsub.s32 0, %v428
      %v430 = vrot.slane %v372, %v429
      %v431 = vmul.f32 %v425, %v430
      %432 = vrot.lane.b32.xlu0 %v422, 1
      %v433 = vpop.permute.xlu0 %432
      %v435 = vlaneseq
      %v436 = vshrl.u32 %v435, 7
      %v437 = vsub.s32 1, %v436
      %v438 = vrot.slane %v372, %v437
      %v439 = vmul.f32 %v433, %v438
      %440 = vrot.lane.b32.xlu0 %v422, 127
      %v441 = vpop.permute.xlu0 %440
      %v443 = vlaneseq
      %v444 = vshrl.u32 %v443, 7
      %v445 = vsub.s32 3, %v444
      %v446 = vrot.slane %v372, %v445
      %v447 = vmul.f32 %v441, %v446
      %v448 = vld [vmem:[%s2] sm:$0xff]
      %v449 = vld [vmem:[%s3] sm:$0xff]
      %451 = vset.pattern.permute.xlu0 0
      %452 = vperm.xlu0 %451, %v449
      %v453 = vpop.permute.xlu0 %452
      %vm455 = vcmask 261120
      %v457 = vsel %vm455, %v448, 0
      %459 = vmatprep.subr.mxu0 0.0
      %460 = vmatpush1.msra.mxu0 %v431
      %461 = vmatprep.subr.mxu0 0.0
      %462 = vmatpush1.msra.mxu0 %v439
      %463 = vmatprep.subr.mxu0 0.0
      %464 = vmatpush1.msra.mxu0 %v422
      %465 = vmatprep.subr.mxu0 0.0
      %466 = vmatpush1.msra.mxu0 %v447
      %467 = vmatprep.subr.mxu0 0.0
      %468 = vmatpush1.msra.mxu0 0.0
      %469 = vmatprep.subr.mxu0 0.0
      %470 = vmatpush1.msra.mxu0 0.0
      %471 = vmatprep.subr.mxu0 0.0
      %472 = vmatpush1.msra.mxu0 0.0
      %473 = vmatprep.subr.mxu0 0.0
      %474 = vmatpush1.msra.mxu0 0.0
      %475 = vmatprep.subr.mxu0 0.0
      %476 = vmatpush1.msra.mxu0 0.0
      %477 = vmatprep.subr.mxu0 0.0
      %478 = vmatpush1.msra.mxu0 0.0
      %479 = vmatprep.subr.mxu0 0.0
      %480 = vmatpush1.msra.mxu0 0.0
      %481 = vmatprep.subr.mxu0 0.0
      %482 = vmatpush1.msra.mxu0 0.0
      %483 = vmatprep.subr.mxu0 0.0
      %484 = vmatpush1.msra.mxu0 0.0
      %485 = vmatprep.subr.mxu0 0.0
      %486 = vmatpush1.msra.mxu0 0.0
      %487 = vmatprep.subr.mxu0 0.0
      %488 = vmatpush1.msra.mxu0 0.0
      %489 = vmatprep.subr.mxu0 0.0
      %490 = vmatpush1.msra.mxu0 0.0
      %491 = vmatprep.subr.mxu0 0.0
      %492 = vmatpush1.msra.mxu0 0.0
      %493 = vmatprep.subr.mxu0 0.0
      %494 = vmatpush1.msra.mxu0 0.0
      %495 = vmatprep.subr.mxu0 0.0
      %496 = vmatpush1.msra.mxu0 0.0
      %497 = vmatprep.subr.mxu0 0.0
      %498 = vmatpush1.msra.mxu0 0.0
      %499 = vmatprep.subr.mxu0 0.0
      %500 = vmatpush1.msra.mxu0 0.0
      %501 = vmatprep.subr.mxu0 0.0
      %502 = vmatpush1.msra.mxu0 0.0
      %503 = vmatprep.subr.mxu0 0.0
      %504 = vmatpush1.msra.mxu0 0.0
      %505 = vmatprep.subr.mxu0 0.0
      %506 = vmatpush1.msra.mxu0 0.0
      %507 = vmatprep.subr.mxu0 0.0
      %508 = vmatpush1.msra.mxu0 0.0
      %509 = vmatprep.subr.mxu0 0.0
      %510 = vmatpush1.msra.mxu0 0.0
      %511 = vmatprep.subr.mxu0 0.0
      %512 = vmatpush1.msra.mxu0 0.0
      %513 = vmatprep.subr.mxu0 0.0
      %514 = vmatpush1.msra.mxu0 0.0
      %515 = vmatprep.subr.mxu0 0.0
      %516 = vmatpush1.msra.mxu0 0.0
      %517 = vmatprep.subr.mxu0 0.0
      %518 = vmatpush1.msra.mxu0 0.0
      %519 = vmatprep.subr.mxu0 0.0
      %520 = vmatpush1.msra.mxu0 0.0
      %521 = vmatprep.subr.mxu0 0.0
      %522 = vmatpush1.msra.mxu0 0.0
      %523 = vmatprep.mubr.f32.mxu0 0.0
      %524 = vmatmul.mubr.f32.gmra.mrb[0].mxu0 %v457
      %v525 = vpop.f32.mrb[0].mxu0
      %v526 = vadd.f32 %v453, %v525
      %v527 = vpop.f32.mrb[0].mxu0
      %528 = vdwg.mxu0
      %530 = vrot.lane.b32.xlu0 %v526, 2
      %v531 = vpop.permute.xlu0 %530
      %v533 = vmul.f32 %v531, %v430
      %534 = vrot.lane.b32.xlu0 %v526, 1
      %v535 = vpop.permute.xlu0 %534
      %v537 = vmul.f32 %v535, %v438
      %538 = vrot.lane.b32.xlu0 %v526, 127
      %v539 = vpop.permute.xlu0 %538
      %v541 = vmul.f32 %v539, %v446
      %542 = vrot.lane.b32.xlu0 %v526, 126
      %v543 = vpop.permute.xlu0 %542
      %v545 = vlaneseq
      %v546 = vshrl.u32 %v545, 7
      %v547 = vsub.s32 4, %v546
      %v548 = vrot.slane %v372, %v547
      %v549 = vmul.f32 %v543, %v548
      %s550 = scalar_lea.vmem %s2, 8
      %v551 = vld [vmem:[%s550] sm:$0xff]
      %552 = vset.pattern.permute.xlu0 1
      %553 = vperm.xlu0 %552, %v449
      %v554 = vpop.permute.xlu0 %553
      %vm556 = vcmask 326656
      %v558 = vsel %vm556, %v551, 0
      %560 = vmatprep.subr.mxu0 0.0
      %561 = vmatpush1.msra.mxu0 %v533
      %562 = vmatprep.subr.mxu0 0.0
      %563 = vmatpush1.msra.mxu0 %v537
      %564 = vmatprep.subr.mxu0 0.0
      %565 = vmatpush1.msra.mxu0 %v526
      %566 = vmatprep.subr.mxu0 0.0
      %567 = vmatpush1.msra.mxu0 %v541
      %568 = vmatprep.subr.mxu0 0.0
      %569 = vmatpush1.msra.mxu0 %v549
      %570 = vmatprep.subr.mxu0 0.0
      %571 = vmatpush1.msra.mxu0 0.0
      %572 = vmatprep.subr.mxu0 0.0
      %573 = vmatpush1.msra.mxu0 0.0
      %574 = vmatprep.subr.mxu0 0.0
      %575 = vmatpush1.msra.mxu0 0.0
      %576 = vmatprep.subr.mxu0 0.0
      %577 = vmatpush1.msra.mxu0 0.0
      %578 = vmatprep.subr.mxu0 0.0
      %579 = vmatpush1.msra.mxu0 0.0
      %580 = vmatprep.subr.mxu0 0.0
      %581 = vmatpush1.msra.mxu0 0.0
      %582 = vmatprep.subr.mxu0 0.0
      %583 = vmatpush1.msra.mxu0 0.0
      %584 = vmatprep.subr.mxu0 0.0
      %585 = vmatpush1.msra.mxu0 0.0
      %586 = vmatprep.subr.mxu0 0.0
      %587 = vmatpush1.msra.mxu0 0.0
      %588 = vmatprep.subr.mxu0 0.0
      %589 = vmatpush1.msra.mxu0 0.0
      %590 = vmatprep.subr.mxu0 0.0
      %591 = vmatpush1.msra.mxu0 0.0
      %592 = vmatprep.subr.mxu0 0.0
      %593 = vmatpush1.msra.mxu0 0.0
      %594 = vmatprep.subr.mxu0 0.0
      %595 = vmatpush1.msra.mxu0 0.0
      %596 = vmatprep.subr.mxu0 0.0
      %597 = vmatpush1.msra.mxu0 0.0
      %598 = vmatprep.subr.mxu0 0.0
      %599 = vmatpush1.msra.mxu0 0.0
      %600 = vmatprep.subr.mxu0 0.0
      %601 = vmatpush1.msra.mxu0 0.0
      %602 = vmatprep.subr.mxu0 0.0
      %603 = vmatpush1.msra.mxu0 0.0
      %604 = vmatprep.subr.mxu0 0.0
      %605 = vmatpush1.msra.mxu0 0.0
      %606 = vmatprep.subr.mxu0 0.0
      %607 = vmatpush1.msra.mxu0 0.0
      %608 = vmatprep.subr.mxu0 0.0
      %609 = vmatpush1.msra.mxu0 0.0
      %610 = vmatprep.subr.mxu0 0.0
      %611 = vmatpush1.msra.mxu0 0.0
      %612 = vmatprep.subr.mxu0 0.0
      %613 = vmatpush1.msra.mxu0 0.0
      %614 = vmatprep.subr.mxu0 0.0
      %615 = vmatpush1.msra.mxu0 0.0
      %616 = vmatprep.subr.mxu0 0.0
      %617 = vmatpush1.msra.mxu0 0.0
      %618 = vmatprep.subr.mxu0 0.0
      %619 = vmatpush1.msra.mxu0 0.0
      %620 = vmatprep.subr.mxu0 0.0
      %621 = vmatpush1.msra.mxu0 0.0
      %622 = vmatprep.subr.mxu0 0.0
      %623 = vmatpush1.msra.mxu0 0.0
      %624 = vmatprep.mubr.f32.mxu0 0.0
      %625 = vmatmul.mubr.f32.gmra.mrb[0].mxu0 %v558
      %v626 = vpop.f32.mrb[0].mxu0
      %v627 = vadd.f32 %v554, %v626
      %v628 = vpop.f32.mrb[0].mxu0
      %629 = vdwg.mxu0
      %v630 = vmul.f32 %v627, %v627
      %631 = vmatprep.subr.mxu0 0.0
      %632 = vmatpush1.msra.mxu0 %v374
      %633 = vmatprep.subr.mxu0 0.0
      %634 = vmatpush1.msra.mxu0 %v375
      %635 = vmatprep.subr.mxu0 0.0
      %636 = vmatpush1.msra.mxu0 %v376
      %637 = vmatprep.subr.mxu0 0.0
      %638 = vmatpush1.msra.mxu0 %v377
      %639 = vmatprep.subr.mxu0 0.0
      %640 = vmatpush1.msra.mxu0 %v378
      %641 = vmatprep.subr.mxu0 0.0
      %642 = vmatpush1.msra.mxu0 %v379
      %643 = vmatprep.subr.mxu0 0.0
      %644 = vmatpush1.msra.mxu0 %v380
      %645 = vmatprep.subr.mxu0 0.0
      %646 = vmatpush1.msra.mxu0 %v381
      %647 = vmatprep.subr.mxu0 0.0
      %648 = vmatpush1.msra.mxu0 %v382
      %649 = vmatprep.subr.mxu0 0.0
      %650 = vmatpush1.msra.mxu0 %v383
      %651 = vmatprep.subr.mxu0 0.0
      %652 = vmatpush1.msra.mxu0 %v384
      %653 = vmatprep.subr.mxu0 0.0
      %654 = vmatpush1.msra.mxu0 %v385
      %655 = vmatprep.subr.mxu0 0.0
      %656 = vmatpush1.msra.mxu0 %v386
      %657 = vmatprep.subr.mxu0 0.0
      %658 = vmatpush1.msra.mxu0 %v387
      %659 = vmatprep.subr.mxu0 0.0
      %660 = vmatpush1.msra.mxu0 %v388
      %661 = vmatprep.subr.mxu0 0.0
      %662 = vmatpush1.msra.mxu0 %v389
      %663 = vmatprep.subr.mxu0 0.0
      %664 = vmatpush1.msra.mxu0 0.0
      %665 = vmatprep.subr.mxu0 0.0
      %666 = vmatpush1.msra.mxu0 0.0
      %667 = vmatprep.subr.mxu0 0.0
      %668 = vmatpush1.msra.mxu0 0.0
      %669 = vmatprep.subr.mxu0 0.0
      %670 = vmatpush1.msra.mxu0 0.0
      %671 = vmatprep.subr.mxu0 0.0
      %672 = vmatpush1.msra.mxu0 0.0
      %673 = vmatprep.subr.mxu0 0.0
      %674 = vmatpush1.msra.mxu0 0.0
      %675 = vmatprep.subr.mxu0 0.0
      %676 = vmatpush1.msra.mxu0 0.0
      %677 = vmatprep.subr.mxu0 0.0
      %678 = vmatpush1.msra.mxu0 0.0
      %679 = vmatprep.subr.mxu0 0.0
      %680 = vmatpush1.msra.mxu0 0.0
      %681 = vmatprep.subr.mxu0 0.0
      %682 = vmatpush1.msra.mxu0 0.0
      %683 = vmatprep.subr.mxu0 0.0
      %684 = vmatpush1.msra.mxu0 0.0
      %685 = vmatprep.subr.mxu0 0.0
      %686 = vmatpush1.msra.mxu0 0.0
      %687 = vmatprep.subr.mxu0 0.0
      %688 = vmatpush1.msra.mxu0 0.0
      %689 = vmatprep.subr.mxu0 0.0
      %690 = vmatpush1.msra.mxu0 0.0
      %691 = vmatprep.subr.mxu0 0.0
      %692 = vmatpush1.msra.mxu0 0.0
      %693 = vmatprep.subr.mxu0 0.0
      %694 = vmatpush1.msra.mxu0 0.0
      %695 = vmatprep.mubr.f32.mxu0 0.0
      %696 = vmatmul.mubr.f32.gmra.mrb[0].mxu0 %v627
      %v697 = vpop.f32.mrb[0].mxu0
      %v698 = vadd.f32 0.0, %v697
      %v699 = vpop.f32.mrb[0].mxu0
      %700 = vmatprep.mubr.f32.mxu0 0.0
      %701 = vmatmul.mubr.f32.gmra.mrb[0].mxu0 %v630
      %v702 = vpop.f32.mrb[0].mxu0
      %v703 = vadd.f32 0.0, %v702
      %v704 = vpop.f32.mrb[0].mxu0
      %705 = vdwg.mxu0
      %v706 = vmul.f32 %v698, %v698
      %v707 = vsub.f32 %v703, %v706
      %v708 = vsub.f32 %v627, %v698
      %v709 = vadd.f32 %v707, 1e-05
      %v710 = vrsqrt.pop %v709
      %v711 = vmul.f32 %v708, %v710
      %v712 = vlaneseq
      %v713 = vshrl.u32 %v712, 7
      %v714 = vsub.s32 5, %v713
      %v715 = vrot.slane %v372, %v714
      %v716 = vmul.f32 %v711, %v715
      %v717 = vlaneseq
      %v718 = vshrl.u32 %v717, 7
      %v719 = vsub.s32 6, %v718
      %v720 = vrot.slane %v372, %v719
      %v721 = vadd.f32 %v716, %v720
      %v722 = vmin.f32 %v721, 20.0
      %v723 = vmul.f32 %v722, 1.442695
      %v724 = vpow.pop %v723
      %v725 = vadd.f32 %v724, 1.0
      %v726 = vmul.f32 %v725, %v725
      %v727 = vsub.f32 %v726, 1.0
      %v728 = vmul.f32 %v721, %v727
      %v729 = vadd.f32 %v726, 1.0
      %v730 = vrcp.pop %v729
      %v731 = vmul.f32 %v728, %v730
      %733 = vrot.lane.b32.xlu0 %v731, 2
      %v734 = vpop.permute.xlu0 %733
      %v736 = vmul.f32 %v734, %v430
      %737 = vrot.lane.b32.xlu0 %v731, 1
      %v738 = vpop.permute.xlu0 %737
      %v740 = vmul.f32 %v738, %v438
      %741 = vrot.lane.b32.xlu0 %v731, 127
      %v742 = vpop.permute.xlu0 %741
      %v744 = vmul.f32 %v742, %v446
      %745 = vrot.lane.b32.xlu0 %v731, 126
      %v746 = vpop.permute.xlu0 %745
      %v748 = vmul.f32 %v746, %v548
      %s749 = scalar_lea.vmem %s2, 16
      %v750 = vld [vmem:[%s749] sm:$0xff]
      %751 = vset.pattern.permute.xlu0 2
      %752 = vperm.xlu0 %751, %v449
      %v753 = vpop.permute.xlu0 %752
      %v756 = vsel %vm556, %v750, 0
      %758 = vmatprep.subr.mxu0 0.0
      %759 = vmatpush1.msra.mxu0 %v736
      %760 = vmatprep.subr.mxu0 0.0
      %761 = vmatpush1.msra.mxu0 %v740
      %762 = vmatprep.subr.mxu0 0.0
      %763 = vmatpush1.msra.mxu0 %v731
      %764 = vmatprep.subr.mxu0 0.0
      %765 = vmatpush1.msra.mxu0 %v744
      %766 = vmatprep.subr.mxu0 0.0
      %767 = vmatpush1.msra.mxu0 %v748
      %768 = vmatprep.subr.mxu0 0.0
      %769 = vmatpush1.msra.mxu0 0.0
      %770 = vmatprep.subr.mxu0 0.0
      %771 = vmatpush1.msra.mxu0 0.0
      %772 = vmatprep.subr.mxu0 0.0
      %773 = vmatpush1.msra.mxu0 0.0
      %774 = vmatprep.subr.mxu0 0.0
      %775 = vmatpush1.msra.mxu0 0.0
      %776 = vmatprep.subr.mxu0 0.0
      %777 = vmatpush1.msra.mxu0 0.0
      %778 = vmatprep.subr.mxu0 0.0
      %779 = vmatpush1.msra.mxu0 0.0
      %780 = vmatprep.subr.mxu0 0.0
      %781 = vmatpush1.msra.mxu0 0.0
      %782 = vmatprep.subr.mxu0 0.0
      %783 = vmatpush1.msra.mxu0 0.0
      %784 = vmatprep.subr.mxu0 0.0
      %785 = vmatpush1.msra.mxu0 0.0
      %786 = vmatprep.subr.mxu0 0.0
      %787 = vmatpush1.msra.mxu0 0.0
      %788 = vmatprep.subr.mxu0 0.0
      %789 = vmatpush1.msra.mxu0 0.0
      %790 = vmatprep.subr.mxu0 0.0
      %791 = vmatpush1.msra.mxu0 0.0
      %792 = vmatprep.subr.mxu0 0.0
      %793 = vmatpush1.msra.mxu0 0.0
      %794 = vmatprep.subr.mxu0 0.0
      %795 = vmatpush1.msra.mxu0 0.0
      %796 = vmatprep.subr.mxu0 0.0
      %797 = vmatpush1.msra.mxu0 0.0
      %798 = vmatprep.subr.mxu0 0.0
      %799 = vmatpush1.msra.mxu0 0.0
      %800 = vmatprep.subr.mxu0 0.0
      %801 = vmatpush1.msra.mxu0 0.0
      %802 = vmatprep.subr.mxu0 0.0
      %803 = vmatpush1.msra.mxu0 0.0
      %804 = vmatprep.subr.mxu0 0.0
      %805 = vmatpush1.msra.mxu0 0.0
      %806 = vmatprep.subr.mxu0 0.0
      %807 = vmatpush1.msra.mxu0 0.0
      %808 = vmatprep.subr.mxu0 0.0
      %809 = vmatpush1.msra.mxu0 0.0
      %810 = vmatprep.subr.mxu0 0.0
      %811 = vmatpush1.msra.mxu0 0.0
      %812 = vmatprep.subr.mxu0 0.0
      %813 = vmatpush1.msra.mxu0 0.0
      %814 = vmatprep.subr.mxu0 0.0
      %815 = vmatpush1.msra.mxu0 0.0
      %816 = vmatprep.subr.mxu0 0.0
      %817 = vmatpush1.msra.mxu0 0.0
      %818 = vmatprep.subr.mxu0 0.0
      %819 = vmatpush1.msra.mxu0 0.0
      %820 = vmatprep.subr.mxu0 0.0
      %821 = vmatpush1.msra.mxu0 0.0
      %822 = vmatprep.mubr.f32.mxu0 0.0
      %823 = vmatmul.mubr.f32.gmra.mrb[0].mxu0 %v756
      %v824 = vpop.f32.mrb[0].mxu0
      %v825 = vadd.f32 %v753, %v824
      %v826 = vpop.f32.mrb[0].mxu0
      %827 = vdwg.mxu0
      %v828 = vmul.f32 %v825, %v825
      %829 = vmatprep.subr.mxu0 0.0
      %830 = vmatpush1.msra.mxu0 %v374
      %831 = vmatprep.subr.mxu0 0.0
      %832 = vmatpush1.msra.mxu0 %v375
      %833 = vmatprep.subr.mxu0 0.0
      %834 = vmatpush1.msra.mxu0 %v376
      %835 = vmatprep.subr.mxu0 0.0
      %836 = vmatpush1.msra.mxu0 %v377
      %837 = vmatprep.subr.mxu0 0.0
      %838 = vmatpush1.msra.mxu0 %v378
      %839 = vmatprep.subr.mxu0 0.0
      %840 = vmatpush1.msra.mxu0 %v379
      %841 = vmatprep.subr.mxu0 0.0
      %842 = vmatpush1.msra.mxu0 %v380
      %843 = vmatprep.subr.mxu0 0.0
      %844 = vmatpush1.msra.mxu0 %v381
      %845 = vmatprep.subr.mxu0 0.0
      %846 = vmatpush1.msra.mxu0 %v382
      %847 = vmatprep.subr.mxu0 0.0
      %848 = vmatpush1.msra.mxu0 %v383
      %849 = vmatprep.subr.mxu0 0.0
      %850 = vmatpush1.msra.mxu0 %v384
      %851 = vmatprep.subr.mxu0 0.0
      %852 = vmatpush1.msra.mxu0 %v385
      %853 = vmatprep.subr.mxu0 0.0
      %854 = vmatpush1.msra.mxu0 %v386
      %855 = vmatprep.subr.mxu0 0.0
      %856 = vmatpush1.msra.mxu0 %v387
      %857 = vmatprep.subr.mxu0 0.0
      %858 = vmatpush1.msra.mxu0 %v388
      %859 = vmatprep.subr.mxu0 0.0
      %860 = vmatpush1.msra.mxu0 %v389
      %861 = vmatprep.subr.mxu0 0.0
      %862 = vmatpush1.msra.mxu0 0.0
      %863 = vmatprep.subr.mxu0 0.0
      %864 = vmatpush1.msra.mxu0 0.0
      %865 = vmatprep.subr.mxu0 0.0
      %866 = vmatpush1.msra.mxu0 0.0
      %867 = vmatprep.subr.mxu0 0.0
      %868 = vmatpush1.msra.mxu0 0.0
      %869 = vmatprep.subr.mxu0 0.0
      %870 = vmatpush1.msra.mxu0 0.0
      %871 = vmatprep.subr.mxu0 0.0
      %872 = vmatpush1.msra.mxu0 0.0
      %873 = vmatprep.subr.mxu0 0.0
      %874 = vmatpush1.msra.mxu0 0.0
      %875 = vmatprep.subr.mxu0 0.0
      %876 = vmatpush1.msra.mxu0 0.0
      %877 = vmatprep.subr.mxu0 0.0
      %878 = vmatpush1.msra.mxu0 0.0
      %879 = vmatprep.subr.mxu0 0.0
      %880 = vmatpush1.msra.mxu0 0.0
      %881 = vmatprep.subr.mxu0 0.0
      %882 = vmatpush1.msra.mxu0 0.0
      %883 = vmatprep.subr.mxu0 0.0
      %884 = vmatpush1.msra.mxu0 0.0
      %885 = vmatprep.subr.mxu0 0.0
      %886 = vmatpush1.msra.mxu0 0.0
      %887 = vmatprep.subr.mxu0 0.0
      %888 = vmatpush1.msra.mxu0 0.0
      %889 = vmatprep.subr.mxu0 0.0
      %890 = vmatpush1.msra.mxu0 0.0
      %891 = vmatprep.subr.mxu0 0.0
      %892 = vmatpush1.msra.mxu0 0.0
      %893 = vmatprep.mubr.f32.mxu0 0.0
      %894 = vmatmul.mubr.f32.gmra.mrb[0].mxu0 %v825
      %v895 = vpop.f32.mrb[0].mxu0
      %v896 = vadd.f32 0.0, %v895
      %v897 = vpop.f32.mrb[0].mxu0
      %898 = vmatprep.mubr.f32.mxu0 0.0
      %899 = vmatmul.mubr.f32.gmra.mrb[0].mxu0 %v828
      %v900 = vpop.f32.mrb[0].mxu0
      %v901 = vadd.f32 0.0, %v900
      %v902 = vpop.f32.mrb[0].mxu0
      %903 = vdwg.mxu0
      %v904 = vmul.f32 %v896, %v896
      %v905 = vsub.f32 %v901, %v904
      %v906 = vsub.f32 %v825, %v896
      %v907 = vadd.f32 %v905, 1e-05
      %v908 = vrsqrt.pop %v907
      %v909 = vmul.f32 %v906, %v908
      %v910 = vlaneseq
      %v911 = vshrl.u32 %v910, 7
      %v912 = vsub.s32 7, %v911
      %v913 = vrot.slane %v372, %v912
      %v914 = vmul.f32 %v909, %v913
      %v915 = vlaneseq
      %v916 = vshrl.u32 %v915, 7
      %v917 = vsub.s32 0, %v916
      %v918 = vrot.slane %v373, %v917
      %v919 = vadd.f32 %v914, %v918
      %v920 = vld [vmem:[%s4] sm:$0xff]
      %v921 = vld [vmem:[%s4 + $0x8] sm:$0xff]
      %v922 = vld [vmem:[%s4 + $0x10] sm:$0xff]
      %vm923 = vcmask 64512
      %v925 = vsel %vm923, %v920, 0
      %v928 = vsel %vm923, %v921, 0
      %v931 = vsel %vm923, %v922, 0
      %933 = vmatprep.subr.mxu0 0.0
      %934 = vmatpush1.msra.mxu0 %v919
      %935 = vmatprep.subr.mxu0 0.0
      %936 = vmatpush1.msra.mxu0 0.0
      %937 = vmatprep.subr.mxu0 0.0
      %938 = vmatpush1.msra.mxu0 0.0
      %939 = vmatprep.subr.mxu0 0.0
      %940 = vmatpush1.msra.mxu0 0.0
      %941 = vmatprep.subr.mxu0 0.0
      %942 = vmatpush1.msra.mxu0 0.0
      %943 = vmatprep.subr.mxu0 0.0
      %944 = vmatpush1.msra.mxu0 0.0
      %945 = vmatprep.subr.mxu0 0.0
      %946 = vmatpush1.msra.mxu0 0.0
      %947 = vmatprep.subr.mxu0 0.0
      %948 = vmatpush1.msra.mxu0 0.0
      %949 = vmatprep.subr.mxu0 0.0
      %950 = vmatpush1.msra.mxu0 0.0
      %951 = vmatprep.subr.mxu0 0.0
      %952 = vmatpush1.msra.mxu0 0.0
      %953 = vmatprep.subr.mxu0 0.0
      %954 = vmatpush1.msra.mxu0 0.0
      %955 = vmatprep.subr.mxu0 0.0
      %956 = vmatpush1.msra.mxu0 0.0
      %957 = vmatprep.subr.mxu0 0.0
      %958 = vmatpush1.msra.mxu0 0.0
      %959 = vmatprep.subr.mxu0 0.0
      %960 = vmatpush1.msra.mxu0 0.0
      %961 = vmatprep.subr.mxu0 0.0
      %962 = vmatpush1.msra.mxu0 0.0
      %963 = vmatprep.subr.mxu0 0.0
      %964 = vmatpush1.msra.mxu0 0.0
      %965 = vmatprep.subr.mxu0 0.0
      %966 = vmatpush1.msra.mxu0 0.0
      %967 = vmatprep.subr.mxu0 0.0
      %968 = vmatpush1.msra.mxu0 0.0
      %969 = vmatprep.subr.mxu0 0.0
      %970 = vmatpush1.msra.mxu0 0.0
      %971 = vmatprep.subr.mxu0 0.0
      %972 = vmatpush1.msra.mxu0 0.0
      %973 = vmatprep.subr.mxu0 0.0
      %974 = vmatpush1.msra.mxu0 0.0
      %975 = vmatprep.subr.mxu0 0.0
      %976 = vmatpush1.msra.mxu0 0.0
      %977 = vmatprep.subr.mxu0 0.0
      %978 = vmatpush1.msra.mxu0 0.0
      %979 = vmatprep.subr.mxu0 0.0
      %980 = vmatpush1.msra.mxu0 0.0
      %981 = vmatprep.subr.mxu0 0.0
      %982 = vmatpush1.msra.mxu0 0.0
      %983 = vmatprep.subr.mxu0 0.0
      %984 = vmatpush1.msra.mxu0 0.0
      %985 = vmatprep.subr.mxu0 0.0
      %986 = vmatpush1.msra.mxu0 0.0
      %987 = vmatprep.subr.mxu0 0.0
      %988 = vmatpush1.msra.mxu0 0.0
      %989 = vmatprep.subr.mxu0 0.0
      %990 = vmatpush1.msra.mxu0 0.0
      %991 = vmatprep.subr.mxu0 0.0
      %992 = vmatpush1.msra.mxu0 0.0
      %993 = vmatprep.subr.mxu0 0.0
      %994 = vmatpush1.msra.mxu0 0.0
      %995 = vmatprep.subr.mxu0 0.0
      %996 = vmatpush1.msra.mxu0 0.0
      %997 = vmatprep.mubr.f32.mxu0 0.0
      %998 = vmatmul.mubr.f32.gmra.mrb[0].mxu0 %v925
      %v999 = vpop.f32.mrb[0].mxu0
      %v1000 = vadd.f32 0.0, %v999
      %v1001 = vpop.f32.mrb[0].mxu0
      %1002 = vmatprep.mubr.f32.mxu0 0.0
      %1003 = vmatmul.mubr.f32.gmra.mrb[0].mxu0 %v928
      %v1004 = vpop.f32.mrb[0].mxu0
      %v1005 = vadd.f32 0.0, %v1004
      %v1006 = vpop.f32.mrb[0].mxu0
      %1007 = vmatprep.mubr.f32.mxu0 0.0
      %1008 = vmatmul.mubr.f32.gmra.mrb[0].mxu0 %v931
      %v1009 = vpop.f32.mrb[0].mxu0
      %v1010 = vadd.f32 0.0, %v1009
      %v1011 = vpop.f32.mrb[0].mxu0
      %1012 = vdwg.mxu0
      %v1013 = vld [vmem:[%s7] sm:$0xff]
      %v1014 = vld [vmem:[%s7 + $0x8] sm:$0xff]
      %v1015 = vld [vmem:[%s7 + $0x10] sm:$0xff]
      %v1016 = vld [vmem:[%s7 + $0x18] sm:$0xff]
      %v1017 = vld [vmem:[%s7 + $0x20] sm:$0xff]
      %v1018 = vld [vmem:[%s7 + $0x28] sm:$0xff]
      %v1019 = vld [vmem:[%s7 + $0x30] sm:$0xff]
      %v1020 = vld [vmem:[%s7 + $0x38] sm:$0xff]
      %v1021 = vld [vmem:[%s7 + $0x40] sm:$0xff]
      %v1022 = vld [vmem:[%s7 + $0x48] sm:$0xff]
      %v1023 = vld [vmem:[%s7 + $0x50] sm:$0xff]
      %v1024 = vld [vmem:[%s7 + $0x58] sm:$0xff]
      %v1025 = vld [vmem:[%s7 + $0x60] sm:$0xff]
      %v1026 = vld [vmem:[%s7 + $0x68] sm:$0xff]
      %v1027 = vld [vmem:[%s7 + $0x70] sm:$0xff]
      %v1028 = vld [vmem:[%s7 + $0x78] sm:$0xff]
      %v1029 = vld [vmem:[%s7 + $0x80] sm:$0xff]
      %v1030 = vld [vmem:[%s7 + $0x88] sm:$0xff]
      %v1031 = vld [vmem:[%s7 + $0x90] sm:$0xff]
      %v1032 = vld [vmem:[%s7 + $0x98] sm:$0xff]
      %v1033 = vld [vmem:[%s7 + $0xa0] sm:$0xff]
      %v1034 = vld [vmem:[%s7 + $0xa8] sm:$0xff]
      %v1035 = vld [vmem:[%s7 + $0xb0] sm:$0xff]
      %v1036 = vld [vmem:[%s7 + $0xb8] sm:$0xff]
      %v1037 = vld [vmem:[%s7 + $0xc0] sm:$0xff]
      %v1038 = vld [vmem:[%s7 + $0xc8] sm:$0xff]
      %v1039 = vld [vmem:[%s7 + $0xd0] sm:$0xff]
      %v1040 = vld [vmem:[%s7 + $0xd8] sm:$0xff]
      %v1041 = vld [vmem:[%s7 + $0xe0] sm:$0xff]
      %v1042 = vld [vmem:[%s7 + $0xe8] sm:$0xff]
      %v1043 = vld [vmem:[%s7 + $0xf0] sm:$0xff]
      %v1044 = vld [vmem:[%s7 + $0xf8] sm:$0xff]
      %v1045 = vld [vmem:[%s7 + $0x100] sm:$0xff]
      %v1046 = vld [vmem:[%s7 + $0x108] sm:$0xff]
      %v1047 = vld [vmem:[%s7 + $0x110] sm:$0xff]
      %v1048 = vld [vmem:[%s7 + $0x118] sm:$0xff]
      %v1049 = vld [vmem:[%s7 + $0x120] sm:$0xff]
      %v1050 = vld [vmem:[%s7 + $0x128] sm:$0xff]
      %v1051 = vld [vmem:[%s7 + $0x130] sm:$0xff]
      %v1052 = vld [vmem:[%s7 + $0x138] sm:$0xff]
      %v1053 = vld [vmem:[%s7 + $0x140] sm:$0xff]
      %v1054 = vld [vmem:[%s7 + $0x148] sm:$0xff]
      %v1055 = vld [vmem:[%s7 + $0x150] sm:$0xff]
      %v1056 = vld [vmem:[%s7 + $0x158] sm:$0xff]
      %v1057 = vld [vmem:[%s7 + $0x160] sm:$0xff]
      %v1058 = vld [vmem:[%s7 + $0x168] sm:$0xff]
      %v1059 = vld [vmem:[%s7 + $0x170] sm:$0xff]
      %v1060 = vld [vmem:[%s7 + $0x178] sm:$0xff]
      %1061 = vmatprep.subr.mxu0 %v1014
      %1062 = vmatpush1.msra.mxu0 %v1013
      %1063 = vmatprep.subr.mxu0 %v1017
      %1064 = vmatpush1.msra.mxu0 %v1016
      %1065 = vmatprep.subr.mxu0 %v1020
      %1066 = vmatpush1.msra.mxu0 %v1019
      %1067 = vmatprep.subr.mxu0 %v1023
      %1068 = vmatpush1.msra.mxu0 %v1022
      %1069 = vmatprep.subr.mxu0 %v1026
      %1070 = vmatpush1.msra.mxu0 %v1025
      %1071 = vmatprep.subr.mxu0 %v1029
      %1072 = vmatpush1.msra.mxu0 %v1028
      %1073 = vmatprep.subr.mxu0 %v1032
      %1074 = vmatpush1.msra.mxu0 %v1031
      %1075 = vmatprep.subr.mxu0 %v1035
      %1076 = vmatpush1.msra.mxu0 %v1034
      %1077 = vmatprep.subr.mxu0 %v1038
      %1078 = vmatpush1.msra.mxu0 %v1037
      %1079 = vmatprep.subr.mxu0 %v1041
      %1080 = vmatpush1.msra.mxu0 %v1040
      %1081 = vmatprep.subr.mxu0 %v1044
      %1082 = vmatpush1.msra.mxu0 %v1043
      %1083 = vmatprep.subr.mxu0 %v1047
      %1084 = vmatpush1.msra.mxu0 %v1046
      %1085 = vmatprep.subr.mxu0 %v1050
      %1086 = vmatpush1.msra.mxu0 %v1049
      %1087 = vmatprep.subr.mxu0 %v1053
      %1088 = vmatpush1.msra.mxu0 %v1052
      %1089 = vmatprep.subr.mxu0 %v1056
      %1090 = vmatpush1.msra.mxu0 %v1055
      %1091 = vmatprep.subr.mxu0 %v1059
      %1092 = vmatpush1.msra.mxu0 %v1058
      %1093 = vmatprep.subr.mxu0 0.0
      %1094 = vmatpush1.msra.mxu0 0.0
      %1095 = vmatprep.subr.mxu0 0.0
      %1096 = vmatpush1.msra.mxu0 0.0
      %1097 = vmatprep.subr.mxu0 0.0
      %1098 = vmatpush1.msra.mxu0 0.0
      %1099 = vmatprep.subr.mxu0 0.0
      %1100 = vmatpush1.msra.mxu0 0.0
      %1101 = vmatprep.subr.mxu0 0.0
      %1102 = vmatpush1.msra.mxu0 0.0
      %1103 = vmatprep.subr.mxu0 0.0
      %1104 = vmatpush1.msra.mxu0 0.0
      %1105 = vmatprep.subr.mxu0 0.0
      %1106 = vmatpush1.msra.mxu0 0.0
      %1107 = vmatprep.subr.mxu0 0.0
      %1108 = vmatpush1.msra.mxu0 0.0
      %1109 = vmatprep.subr.mxu0 0.0
      %1110 = vmatpush1.msra.mxu0 0.0
      %1111 = vmatprep.subr.mxu0 0.0
      %1112 = vmatpush1.msra.mxu0 0.0
      %1113 = vmatprep.subr.mxu0 0.0
      %1114 = vmatpush1.msra.mxu0 0.0
      %1115 = vmatprep.subr.mxu0 0.0
      %1116 = vmatpush1.msra.mxu0 0.0
      %1117 = vmatprep.subr.mxu0 0.0
      %1118 = vmatpush1.msra.mxu0 0.0
      %1119 = vmatprep.subr.mxu0 0.0
      %1120 = vmatpush1.msra.mxu0 0.0
      %1121 = vmatprep.subr.mxu0 0.0
      %1122 = vmatpush1.msra.mxu0 0.0
      %1123 = vmatprep.subr.mxu0 0.0
      %1124 = vmatpush1.msra.mxu0 0.0
      %1125 = vmatprep.mubr.f32.mxu0 0.0
      %1126 = vmatmul.mubr.f32.gmra.mrb[0].mxu0 %v1000
      %v1127 = vpop.f32.mrb[0].mxu0
      %v1128 = vadd.f32 0.0, %v1127
      %v1129 = vpop.f32.mrb[0].mxu0
      %1130 = vmatprep.mubr.f32.mxu0 0.0
      %1131 = vmatmul.mubr.f32.gmra.mrb[0].mxu0 %v1005
      %v1132 = vpop.f32.mrb[0].mxu0
      %v1133 = vpop.f32.mrb[0].mxu0
      %v1134 = vadd.f32 0.0, %v1133
      %1135 = vmatprep.mubr.f32.mxu0 0.0
      %1136 = vmatmul.mubr.f32.gmra.mrb[0].mxu0 %v1010
      %v1137 = vpop.f32.mrb[0].mxu0
      %v1138 = vpop.f32.mrb[0].mxu0
      %1139 = vdwg.mxu0
      %1140 = vmatprep.subr.mxu0 0.0
      %1141 = vmatpush1.msra.mxu0 %v1015
      %1142 = vmatprep.subr.mxu0 0.0
      %1143 = vmatpush1.msra.mxu0 %v1018
      %1144 = vmatprep.subr.mxu0 0.0
      %1145 = vmatpush1.msra.mxu0 %v1021
      %1146 = vmatprep.subr.mxu0 0.0
      %1147 = vmatpush1.msra.mxu0 %v1024
      %1148 = vmatprep.subr.mxu0 0.0
      %1149 = vmatpush1.msra.mxu0 %v1027
      %1150 = vmatprep.subr.mxu0 0.0
      %1151 = vmatpush1.msra.mxu0 %v1030
      %1152 = vmatprep.subr.mxu0 0.0
      %1153 = vmatpush1.msra.mxu0 %v1033
      %1154 = vmatprep.subr.mxu0 0.0
      %1155 = vmatpush1.msra.mxu0 %v1036
      %1156 = vmatprep.subr.mxu0 0.0
      %1157 = vmatpush1.msra.mxu0 %v1039
      %1158 = vmatprep.subr.mxu0 0.0
      %1159 = vmatpush1.msra.mxu0 %v1042
      %1160 = vmatprep.subr.mxu0 0.0
      %1161 = vmatpush1.msra.mxu0 %v1045
      %1162 = vmatprep.subr.mxu0 0.0
      %1163 = vmatpush1.msra.mxu0 %v1048
      %1164 = vmatprep.subr.mxu0 0.0
      %1165 = vmatpush1.msra.mxu0 %v1051
      %1166 = vmatprep.subr.mxu0 0.0
      %1167 = vmatpush1.msra.mxu0 %v1054
      %1168 = vmatprep.subr.mxu0 0.0
      %1169 = vmatpush1.msra.mxu0 %v1057
      %1170 = vmatprep.subr.mxu0 0.0
      %1171 = vmatpush1.msra.mxu0 %v1060
      %1172 = vmatprep.subr.mxu0 0.0
      %1173 = vmatpush1.msra.mxu0 0.0
      %1174 = vmatprep.subr.mxu0 0.0
      %1175 = vmatpush1.msra.mxu0 0.0
      %1176 = vmatprep.subr.mxu0 0.0
      %1177 = vmatpush1.msra.mxu0 0.0
      %1178 = vmatprep.subr.mxu0 0.0
      %1179 = vmatpush1.msra.mxu0 0.0
      %1180 = vmatprep.subr.mxu0 0.0
      %1181 = vmatpush1.msra.mxu0 0.0
      %1182 = vmatprep.subr.mxu0 0.0
      %1183 = vmatpush1.msra.mxu0 0.0
      %1184 = vmatprep.subr.mxu0 0.0
      %1185 = vmatpush1.msra.mxu0 0.0
      %1186 = vmatprep.subr.mxu0 0.0
      %1187 = vmatpush1.msra.mxu0 0.0
      %1188 = vmatprep.subr.mxu0 0.0
      %1189 = vmatpush1.msra.mxu0 0.0
      %1190 = vmatprep.subr.mxu0 0.0
      %1191 = vmatpush1.msra.mxu0 0.0
      %1192 = vmatprep.subr.mxu0 0.0
      %1193 = vmatpush1.msra.mxu0 0.0
      %1194 = vmatprep.subr.mxu0 0.0
      %1195 = vmatpush1.msra.mxu0 0.0
      %1196 = vmatprep.subr.mxu0 0.0
      %1197 = vmatpush1.msra.mxu0 0.0
      %1198 = vmatprep.subr.mxu0 0.0
      %1199 = vmatpush1.msra.mxu0 0.0
      %1200 = vmatprep.subr.mxu0 0.0
      %1201 = vmatpush1.msra.mxu0 0.0
      %1202 = vmatprep.subr.mxu0 0.0
      %1203 = vmatpush1.msra.mxu0 0.0
      %1204 = vmatprep.mubr.f32.mxu0 0.0
      %1205 = vmatmul.mubr.f32.gmra.mrb[0].mxu0 %v1000
      %v1206 = vpop.f32.mrb[0].mxu0
      %v1207 = vpop.f32.mrb[0].mxu0
      %1208 = vmatprep.mubr.f32.mxu0 0.0
      %1209 = vmatmul.mubr.f32.gmra.mrb[0].mxu0 %v1005
      %v1210 = vpop.f32.mrb[0].mxu0
      %v1211 = vpop.f32.mrb[0].mxu0
      %1212 = vmatprep.mubr.f32.mxu0 0.0
      %1213 = vmatmul.mubr.f32.gmra.mrb[0].mxu0 %v1010
      %v1214 = vpop.f32.mrb[0].mxu0
      %v1215 = vadd.f32 0.0, %v1214
      %v1216 = vpop.f32.mrb[0].mxu0
      %1217 = vdwg.mxu0
      %v1218 = vlaneseq
      %v1219 = vshrl.u32 %v1218, 7
      %v1220 = vsub.s32 3, %v1219
      %v1221 = vrot.slane %v373, %v1220
      %v1222 = vadd.f32 %v1128, %v1221
      %v1223 = vlaneseq
      %v1224 = vshrl.u32 %v1223, 7
      %v1225 = vsub.s32 4, %v1224
      %v1226 = vrot.slane %v373, %v1225
      %v1227 = vadd.f32 %v1134, %v1226
      %v1228 = vlaneseq
      %v1229 = vshrl.u32 %v1228, 7
      %v1230 = vsub.s32 5, %v1229
      %v1231 = vrot.slane %v373, %v1230
      %v1232 = vadd.f32 %v1215, %v1231
      %v1233 = vmul.f32 %v1227, %v390
      %v1234 = vmul.f32 %v1227, %v391
      %v1235 = vmul.f32 %v1227, %v392
      %v1236 = vmul.f32 %v1227, %v393
      %v1237 = vmul.f32 %v1227, %v394
      %v1238 = vmul.f32 %v1227, %v395
      %v1239 = vmul.f32 %v1227, %v396
      %v1240 = vmul.f32 %v1227, %v397
      %v1241 = vmul.f32 %v1227, %v398
      %v1242 = vmul.f32 %v1227, %v399
      %v1243 = vmul.f32 %v1227, %v400
      %v1244 = vmul.f32 %v1227, %v401
      %v1245 = vmul.f32 %v1227, %v402
      %v1246 = vmul.f32 %v1227, %v403
      %v1247 = vmul.f32 %v1227, %v404
      %v1248 = vmul.f32 %v1227, %v405
      %v1249 = vmul.f32 %v1227, %v406
      %v1250 = vmul.f32 %v1227, %v407
      %v1251 = vmul.f32 %v1227, %v408
      %v1252 = vmul.f32 %v1227, %v409
      %v1253 = vmul.f32 %v1227, %v410
      %v1254 = vmul.f32 %v1227, %v411
      %v1255 = vmul.f32 %v1227, %v412
      %v1256 = vmul.f32 %v1227, %v413
      %v1257 = vmul.f32 %v1227, %v414
      %v1258 = vmul.f32 %v1227, %v415
      %v1259 = vmul.f32 %v1227, %v416
      %v1260 = vmul.f32 %v1227, %v417
      %v1261 = vmul.f32 %v1227, %v418
      %v1262 = vmul.f32 %v1227, %v419
      %v1263 = vmul.f32 %v1227, %v420
      %v1264 = vmul.f32 %v1227, %v421
      %v1265 = vmul.f32 %v1232, %v390
      %v1266 = vmul.f32 %v1232, %v391
      %v1267 = vmul.f32 %v1232, %v392
      %v1268 = vmul.f32 %v1232, %v393
      %v1269 = vmul.f32 %v1232, %v394
      %v1270 = vmul.f32 %v1232, %v395
      %v1271 = vmul.f32 %v1232, %v396
      %v1272 = vmul.f32 %v1232, %v397
      %v1273 = vmul.f32 %v1232, %v398
      %v1274 = vmul.f32 %v1232, %v399
      %v1275 = vmul.f32 %v1232, %v400
      %v1276 = vmul.f32 %v1232, %v401
      %v1277 = vmul.f32 %v1232, %v402
      %v1278 = vmul.f32 %v1232, %v403
      %v1279 = vmul.f32 %v1232, %v404
      %v1280 = vmul.f32 %v1232, %v405
      %v1281 = vmul.f32 %v1232, %v406
      %v1282 = vmul.f32 %v1232, %v407
      %v1283 = vmul.f32 %v1232, %v408
      %v1284 = vmul.f32 %v1232, %v409
      %v1285 = vmul.f32 %v1232, %v410
      %v1286 = vmul.f32 %v1232, %v411
      %v1287 = vmul.f32 %v1232, %v412
      %v1288 = vmul.f32 %v1232, %v413
      %v1289 = vmul.f32 %v1232, %v414
      %v1290 = vmul.f32 %v1232, %v415
      %v1291 = vmul.f32 %v1232, %v416
      %v1292 = vmul.f32 %v1232, %v417
      %v1293 = vmul.f32 %v1232, %v418
      %v1294 = vmul.f32 %v1232, %v419
      %v1295 = vmul.f32 %v1232, %v420
      %v1296 = vmul.f32 %v1232, %v421
      %1297 = vmatprep.subr.mxu0 0.0
      %1298 = vmatpush1.xpose.msra.mxu0 %v1233
      %1299 = vmatprep.subr.mxu0 0.0
      %1300 = vmatpush1.xpose.msra.mxu0 %v1234
      %1301 = vmatprep.subr.mxu0 0.0
      %1302 = vmatpush1.xpose.msra.mxu0 %v1235
      %1303 = vmatprep.subr.mxu0 0.0
      %1304 = vmatpush1.xpose.msra.mxu0 %v1236
      %1305 = vmatprep.subr.mxu0 0.0
      %1306 = vmatpush1.xpose.msra.mxu0 %v1237
      %1307 = vmatprep.subr.mxu0 0.0
      %1308 = vmatpush1.xpose.msra.mxu0 %v1238
      %1309 = vmatprep.subr.mxu0 0.0
      %1310 = vmatpush1.xpose.msra.mxu0 %v1239
      %1311 = vmatprep.subr.mxu0 0.0
      %1312 = vmatpush1.xpose.msra.mxu0 %v1240
      %1313 = vmatprep.subr.mxu0 0.0
      %1314 = vmatpush1.xpose.msra.mxu0 %v1241
      %1315 = vmatprep.subr.mxu0 0.0
      %1316 = vmatpush1.xpose.msra.mxu0 %v1242
      %1317 = vmatprep.subr.mxu0 0.0
      %1318 = vmatpush1.xpose.msra.mxu0 %v1243
      %1319 = vmatprep.subr.mxu0 0.0
      %1320 = vmatpush1.xpose.msra.mxu0 %v1244
      %1321 = vmatprep.subr.mxu0 0.0
      %1322 = vmatpush1.xpose.msra.mxu0 %v1245
      %1323 = vmatprep.subr.mxu0 0.0
      %1324 = vmatpush1.xpose.msra.mxu0 %v1246
      %1325 = vmatprep.subr.mxu0 0.0
      %1326 = vmatpush1.xpose.msra.mxu0 %v1247
      %1327 = vmatprep.subr.mxu0 0.0
      %1328 = vmatpush1.xpose.msra.mxu0 %v1248
      %1329 = vmatprep.subr.mxu0 0.0
      %1330 = vmatpush1.xpose.msra.mxu0 %v1249
      %1331 = vmatprep.subr.mxu0 0.0
      %1332 = vmatpush1.xpose.msra.mxu0 %v1250
      %1333 = vmatprep.subr.mxu0 0.0
      %1334 = vmatpush1.xpose.msra.mxu0 %v1251
      %1335 = vmatprep.subr.mxu0 0.0
      %1336 = vmatpush1.xpose.msra.mxu0 %v1252
      %1337 = vmatprep.subr.mxu0 0.0
      %1338 = vmatpush1.xpose.msra.mxu0 %v1253
      %1339 = vmatprep.subr.mxu0 0.0
      %1340 = vmatpush1.xpose.msra.mxu0 %v1254
      %1341 = vmatprep.subr.mxu0 0.0
      %1342 = vmatpush1.xpose.msra.mxu0 %v1255
      %1343 = vmatprep.subr.mxu0 0.0
      %1344 = vmatpush1.xpose.msra.mxu0 %v1256
      %1345 = vmatprep.subr.mxu0 0.0
      %1346 = vmatpush1.xpose.msra.mxu0 %v1257
      %1347 = vmatprep.subr.mxu0 0.0
      %1348 = vmatpush1.xpose.msra.mxu0 %v1258
      %1349 = vmatprep.subr.mxu0 0.0
      %1350 = vmatpush1.xpose.msra.mxu0 %v1259
      %1351 = vmatprep.subr.mxu0 0.0
      %1352 = vmatpush1.xpose.msra.mxu0 %v1260
      %1353 = vmatprep.subr.mxu0 0.0
      %1354 = vmatpush1.xpose.msra.mxu0 %v1261
      %1355 = vmatprep.subr.mxu0 0.0
      %1356 = vmatpush1.xpose.msra.mxu0 %v1262
      %1357 = vmatprep.subr.mxu0 0.0
      %1358 = vmatpush1.xpose.msra.mxu0 %v1263
      %1359 = vmatprep.subr.mxu0 0.0
      %1360 = vmatpush1.xpose.msra.mxu0 %v1264
      %1361 = vmatprep.mubr.f32.mxu0 0.0
      %1362 = vmatmul.mubr.f32.gmra.mrb[0].mxu0 %v1222
      %v1363 = vpop.f32.mrb[0].mxu0
      %v1364 = vadd.f32 0.0, %v1363
      %v1365 = vpop.f32.mrb[0].mxu0
      %v1366 = vadd.f32 0.0, %v1365
      %1367 = vdwg.mxu0
      %v1368 = vmax.f32 %v1364, %v1366
      %1369 = vmax.xlane.f32.xlu0 %v1368
      %v1370 = vpop.xlane.xlu0 %1369
      %v1371 = vsub.f32 %v1364, %v1370
      %v1372 = vsub.f32 %v1366, %v1370
      %v1373 = vmul.f32 %v1371, 1.442695
      %v1374 = vpow.pop %v1373
      %v1375 = vmul.f32 %v1372, 1.442695
      %v1376 = vpow.pop %v1375
      %1377 = vmatprep.subr.mxu0 0.0
      %1378 = vmatpush1.msra.mxu0 %v1265
      %1379 = vmatprep.subr.mxu0 0.0
      %1380 = vmatpush1.msra.mxu0 %v1266
      %1381 = vmatprep.subr.mxu0 0.0
      %1382 = vmatpush1.msra.mxu0 %v1267
      %1383 = vmatprep.subr.mxu0 0.0
      %1384 = vmatpush1.msra.mxu0 %v1268
      %1385 = vmatprep.subr.mxu0 0.0
      %1386 = vmatpush1.msra.mxu0 %v1269
      %1387 = vmatprep.subr.mxu0 0.0
      %1388 = vmatpush1.msra.mxu0 %v1270
      %1389 = vmatprep.subr.mxu0 0.0
      %1390 = vmatpush1.msra.mxu0 %v1271
      %1391 = vmatprep.subr.mxu0 0.0
      %1392 = vmatpush1.msra.mxu0 %v1272
      %1393 = vmatprep.subr.mxu0 0.0
      %1394 = vmatpush1.msra.mxu0 %v1273
      %1395 = vmatprep.subr.mxu0 0.0
      %1396 = vmatpush1.msra.mxu0 %v1274
      %1397 = vmatprep.subr.mxu0 0.0
      %1398 = vmatpush1.msra.mxu0 %v1275
      %1399 = vmatprep.subr.mxu0 0.0
      %1400 = vmatpush1.msra.mxu0 %v1276
      %1401 = vmatprep.subr.mxu0 0.0
      %1402 = vmatpush1.msra.mxu0 %v1277
      %1403 = vmatprep.subr.mxu0 0.0
      %1404 = vmatpush1.msra.mxu0 %v1278
      %1405 = vmatprep.subr.mxu0 0.0
      %1406 = vmatpush1.msra.mxu0 %v1279
      %1407 = vmatprep.subr.mxu0 0.0
      %1408 = vmatpush1.msra.mxu0 %v1280
      %1409 = vmatprep.subr.mxu0 0.0
      %1410 = vmatpush1.msra.mxu0 %v1281
      %1411 = vmatprep.subr.mxu0 0.0
      %1412 = vmatpush1.msra.mxu0 %v1282
      %1413 = vmatprep.subr.mxu0 0.0
      %1414 = vmatpush1.msra.mxu0 %v1283
      %1415 = vmatprep.subr.mxu0 0.0
      %1416 = vmatpush1.msra.mxu0 %v1284
      %1417 = vmatprep.subr.mxu0 0.0
      %1418 = vmatpush1.msra.mxu0 %v1285
      %1419 = vmatprep.subr.mxu0 0.0
      %1420 = vmatpush1.msra.mxu0 %v1286
      %1421 = vmatprep.subr.mxu0 0.0
      %1422 = vmatpush1.msra.mxu0 %v1287
      %1423 = vmatprep.subr.mxu0 0.0
      %1424 = vmatpush1.msra.mxu0 %v1288
      %1425 = vmatprep.subr.mxu0 0.0
      %1426 = vmatpush1.msra.mxu0 %v1289
      %1427 = vmatprep.subr.mxu0 0.0
      %1428 = vmatpush1.msra.mxu0 %v1290
      %1429 = vmatprep.subr.mxu0 0.0
      %1430 = vmatpush1.msra.mxu0 %v1291
      %1431 = vmatprep.subr.mxu0 0.0
      %1432 = vmatpush1.msra.mxu0 %v1292
      %1433 = vmatprep.subr.mxu0 0.0
      %1434 = vmatpush1.msra.mxu0 %v1293
      %1435 = vmatprep.subr.mxu0 0.0
      %1436 = vmatpush1.msra.mxu0 %v1294
      %1437 = vmatprep.subr.mxu0 0.0
      %1438 = vmatpush1.msra.mxu0 %v1295
      %1439 = vmatprep.subr.mxu0 0.0
      %1440 = vmatpush1.msra.mxu0 %v1296
      %1441 = vmatprep.mubr.f32.mxu0 %v1376
      %1442 = vmatmul.mubr.f32.gmra.mrb[0].mxu0 %v1374
      %v1443 = vpop.f32.mrb[0].mxu0
      %v1444 = vadd.f32 0.0, %v1443
      %v1445 = vpop.f32.mrb[0].mxu0
      %1446 = vdwg.mxu0
      %1447 = vmatprep.subr.mxu0 0.0
      %1448 = vmatpush1.msra.mxu0 %v390
      %1449 = vmatprep.subr.mxu0 0.0
      %1450 = vmatpush1.msra.mxu0 %v391
      %1451 = vmatprep.subr.mxu0 0.0
      %1452 = vmatpush1.msra.mxu0 %v392
      %1453 = vmatprep.subr.mxu0 0.0
      %1454 = vmatpush1.msra.mxu0 %v393
      %1455 = vmatprep.subr.mxu0 0.0
      %1456 = vmatpush1.msra.mxu0 %v394
      %1457 = vmatprep.subr.mxu0 0.0
      %1458 = vmatpush1.msra.mxu0 %v395
      %1459 = vmatprep.subr.mxu0 0.0
      %1460 = vmatpush1.msra.mxu0 %v396
      %1461 = vmatprep.subr.mxu0 0.0
      %1462 = vmatpush1.msra.mxu0 %v397
      %1463 = vmatprep.subr.mxu0 0.0
      %1464 = vmatpush1.msra.mxu0 %v398
      %1465 = vmatprep.subr.mxu0 0.0
      %1466 = vmatpush1.msra.mxu0 %v399
      %1467 = vmatprep.subr.mxu0 0.0
      %1468 = vmatpush1.msra.mxu0 %v400
      %1469 = vmatprep.subr.mxu0 0.0
      %1470 = vmatpush1.msra.mxu0 %v401
      %1471 = vmatprep.subr.mxu0 0.0
      %1472 = vmatpush1.msra.mxu0 %v402
      %1473 = vmatprep.subr.mxu0 0.0
      %1474 = vmatpush1.msra.mxu0 %v403
      %1475 = vmatprep.subr.mxu0 0.0
      %1476 = vmatpush1.msra.mxu0 %v404
      %1477 = vmatprep.subr.mxu0 0.0
      %1478 = vmatpush1.msra.mxu0 %v405
      %1479 = vmatprep.subr.mxu0 0.0
      %1480 = vmatpush1.msra.mxu0 %v406
      %1481 = vmatprep.subr.mxu0 0.0
      %1482 = vmatpush1.msra.mxu0 %v407
      %1483 = vmatprep.subr.mxu0 0.0
      %1484 = vmatpush1.msra.mxu0 %v408
      %1485 = vmatprep.subr.mxu0 0.0
      %1486 = vmatpush1.msra.mxu0 %v409
      %1487 = vmatprep.subr.mxu0 0.0
      %1488 = vmatpush1.msra.mxu0 %v410
      %1489 = vmatprep.subr.mxu0 0.0
      %1490 = vmatpush1.msra.mxu0 %v411
      %1491 = vmatprep.subr.mxu0 0.0
      %1492 = vmatpush1.msra.mxu0 %v412
      %1493 = vmatprep.subr.mxu0 0.0
      %1494 = vmatpush1.msra.mxu0 %v413
      %1495 = vmatprep.subr.mxu0 0.0
      %1496 = vmatpush1.msra.mxu0 %v414
      %1497 = vmatprep.subr.mxu0 0.0
      %1498 = vmatpush1.msra.mxu0 %v415
      %1499 = vmatprep.subr.mxu0 0.0
      %1500 = vmatpush1.msra.mxu0 %v416
      %1501 = vmatprep.subr.mxu0 0.0
      %1502 = vmatpush1.msra.mxu0 %v417
      %1503 = vmatprep.subr.mxu0 0.0
      %1504 = vmatpush1.msra.mxu0 %v418
      %1505 = vmatprep.subr.mxu0 0.0
      %1506 = vmatpush1.msra.mxu0 %v419
      %1507 = vmatprep.subr.mxu0 0.0
      %1508 = vmatpush1.msra.mxu0 %v420
      %1509 = vmatprep.subr.mxu0 0.0
      %1510 = vmatpush1.msra.mxu0 %v421
      %1511 = vmatprep.mubr.f32.mxu0 %v1376
      %1512 = vmatmul.mubr.f32.gmra.mrb[0].mxu0 %v1374
      %v1513 = vpop.f32.mrb[0].mxu0
      %v1514 = vadd.f32 0.0, %v1513
      %v1515 = vpop.f32.mrb[0].mxu0
      %1516 = vdwg.mxu0
      %v1517 = vmax.f32 %v1514, 1e-30
      %v1518 = vrcp.pop %v1517
      %v1519 = vmul.f32 %v1444, %v1518
      %v1520 = vld [vmem:[%s8] sm:$0xff]
      %v1521 = vld [vmem:[%s8 + $0x8] sm:$0xff]
      %v1522 = vld [vmem:[%s8 + $0x10] sm:$0xff]
      %v1523 = vld [vmem:[%s8 + $0x18] sm:$0xff]
      %v1524 = vld [vmem:[%s8 + $0x20] sm:$0xff]
      %v1525 = vld [vmem:[%s8 + $0x28] sm:$0xff]
      %v1526 = vld [vmem:[%s8 + $0x30] sm:$0xff]
      %v1527 = vld [vmem:[%s8 + $0x38] sm:$0xff]
      %v1528 = vld [vmem:[%s8 + $0x40] sm:$0xff]
      %v1529 = vld [vmem:[%s8 + $0x48] sm:$0xff]
      %v1530 = vld [vmem:[%s8 + $0x50] sm:$0xff]
      %v1531 = vld [vmem:[%s8 + $0x58] sm:$0xff]
      %v1532 = vld [vmem:[%s8 + $0x60] sm:$0xff]
      %v1533 = vld [vmem:[%s8 + $0x68] sm:$0xff]
      %v1534 = vld [vmem:[%s8 + $0x70] sm:$0xff]
      %v1535 = vld [vmem:[%s8 + $0x78] sm:$0xff]
      %v1536 = vlaneseq
      %v1537 = vshrl.u32 %v1536, 7
      %v1538 = vsub.s32 6, %v1537
      %v1539 = vrot.slane %v373, %v1538
      %1540 = vmatprep.subr.mxu0 0.0
      %1541 = vmatpush1.msra.mxu0 %v1520
      %1542 = vmatprep.subr.mxu0 0.0
      %1543 = vmatpush1.msra.mxu0 %v1521
      %1544 = vmatprep.subr.mxu0 0.0
      %1545 = vmatpush1.msra.mxu0 %v1522
      %1546 = vmatprep.subr.mxu0 0.0
      %1547 = vmatpush1.msra.mxu0 %v1523
      %1548 = vmatprep.subr.mxu0 0.0
      %1549 = vmatpush1.msra.mxu0 %v1524
      %1550 = vmatprep.subr.mxu0 0.0
      %1551 = vmatpush1.msra.mxu0 %v1525
      %1552 = vmatprep.subr.mxu0 0.0
      %1553 = vmatpush1.msra.mxu0 %v1526
      %1554 = vmatprep.subr.mxu0 0.0
      %1555 = vmatpush1.msra.mxu0 %v1527
      %1556 = vmatprep.subr.mxu0 0.0
      %1557 = vmatpush1.msra.mxu0 %v1528
      %1558 = vmatprep.subr.mxu0 0.0
      %1559 = vmatpush1.msra.mxu0 %v1529
      %1560 = vmatprep.subr.mxu0 0.0
      %1561 = vmatpush1.msra.mxu0 %v1530
      %1562 = vmatprep.subr.mxu0 0.0
      %1563 = vmatpush1.msra.mxu0 %v1531
      %1564 = vmatprep.subr.mxu0 0.0
      %1565 = vmatpush1.msra.mxu0 %v1532
      %1566 = vmatprep.subr.mxu0 0.0
      %1567 = vmatpush1.msra.mxu0 %v1533
      %1568 = vmatprep.subr.mxu0 0.0
      %1569 = vmatpush1.msra.mxu0 %v1534
      %1570 = vmatprep.subr.mxu0 0.0
      %1571 = vmatpush1.msra.mxu0 %v1535
      %1572 = vmatprep.subr.mxu0 0.0
      %1573 = vmatpush1.msra.mxu0 0.0
      %1574 = vmatprep.subr.mxu0 0.0
      %1575 = vmatpush1.msra.mxu0 0.0
      %1576 = vmatprep.subr.mxu0 0.0
      %1577 = vmatpush1.msra.mxu0 0.0
      %1578 = vmatprep.subr.mxu0 0.0
      %1579 = vmatpush1.msra.mxu0 0.0
      %1580 = vmatprep.subr.mxu0 0.0
      %1581 = vmatpush1.msra.mxu0 0.0
      %1582 = vmatprep.subr.mxu0 0.0
      %1583 = vmatpush1.msra.mxu0 0.0
      %1584 = vmatprep.subr.mxu0 0.0
      %1585 = vmatpush1.msra.mxu0 0.0
      %1586 = vmatprep.subr.mxu0 0.0
      %1587 = vmatpush1.msra.mxu0 0.0
      %1588 = vmatprep.subr.mxu0 0.0
      %1589 = vmatpush1.msra.mxu0 0.0
      %1590 = vmatprep.subr.mxu0 0.0
      %1591 = vmatpush1.msra.mxu0 0.0
      %1592 = vmatprep.subr.mxu0 0.0
      %1593 = vmatpush1.msra.mxu0 0.0
      %1594 = vmatprep.subr.mxu0 0.0
      %1595 = vmatpush1.msra.mxu0 0.0
      %1596 = vmatprep.subr.mxu0 0.0
      %1597 = vmatpush1.msra.mxu0 0.0
      %1598 = vmatprep.subr.mxu0 0.0
      %1599 = vmatpush1.msra.mxu0 0.0
      %1600 = vmatprep.subr.mxu0 0.0
      %1601 = vmatpush1.msra.mxu0 0.0
      %1602 = vmatprep.subr.mxu0 0.0
      %1603 = vmatpush1.msra.mxu0 0.0
      %1604 = vmatprep.mubr.f32.mxu0 0.0
      %1605 = vmatmul.mubr.f32.gmra.mrb[0].mxu0 %v1519
      %v1606 = vpop.f32.mrb[0].mxu0
      %v1607 = vadd.f32 %v1539, %v1606
      %v1608 = vpop.f32.mrb[0].mxu0
      %1609 = vdwg.mxu0
      %v1610 = vld [vmem:[%s4 + $0x18] sm:$0xff]
      %1611 = vset.pattern.permute.xlu0 4
      %1612 = vperm.xlu0 %1611, %v449
      %v1613 = vpop.permute.xlu0 %1612
      %v1616 = vsel %vm923, %v1610, 0
      %1618 = vmatprep.subr.mxu0 0.0
      %1619 = vmatpush1.msra.mxu0 %v1607
      %1620 = vmatprep.subr.mxu0 0.0
      %1621 = vmatpush1.msra.mxu0 0.0
      %1622 = vmatprep.subr.mxu0 0.0
      %1623 = vmatpush1.msra.mxu0 0.0
      %1624 = vmatprep.subr.mxu0 0.0
      %1625 = vmatpush1.msra.mxu0 0.0
      %1626 = vmatprep.subr.mxu0 0.0
      %1627 = vmatpush1.msra.mxu0 0.0
      %1628 = vmatprep.subr.mxu0 0.0
      %1629 = vmatpush1.msra.mxu0 0.0
      %1630 = vmatprep.subr.mxu0 0.0
      %1631 = vmatpush1.msra.mxu0 0.0
      %1632 = vmatprep.subr.mxu0 0.0
      %1633 = vmatpush1.msra.mxu0 0.0
      %1634 = vmatprep.subr.mxu0 0.0
      %1635 = vmatpush1.msra.mxu0 0.0
      %1636 = vmatprep.subr.mxu0 0.0
      %1637 = vmatpush1.msra.mxu0 0.0
      %1638 = vmatprep.subr.mxu0 0.0
      %1639 = vmatpush1.msra.mxu0 0.0
      %1640 = vmatprep.subr.mxu0 0.0
      %1641 = vmatpush1.msra.mxu0 0.0
      %1642 = vmatprep.subr.mxu0 0.0
      %1643 = vmatpush1.msra.mxu0 0.0
      %1644 = vmatprep.subr.mxu0 0.0
      %1645 = vmatpush1.msra.mxu0 0.0
      %1646 = vmatprep.subr.mxu0 0.0
      %1647 = vmatpush1.msra.mxu0 0.0
      %1648 = vmatprep.subr.mxu0 0.0
      %1649 = vmatpush1.msra.mxu0 0.0
      %1650 = vmatprep.subr.mxu0 0.0
      %1651 = vmatpush1.msra.mxu0 0.0
      %1652 = vmatprep.subr.mxu0 0.0
      %1653 = vmatpush1.msra.mxu0 0.0
      %1654 = vmatprep.subr.mxu0 0.0
      %1655 = vmatpush1.msra.mxu0 0.0
      %1656 = vmatprep.subr.mxu0 0.0
      %1657 = vmatpush1.msra.mxu0 0.0
      %1658 = vmatprep.subr.mxu0 0.0
      %1659 = vmatpush1.msra.mxu0 0.0
      %1660 = vmatprep.subr.mxu0 0.0
      %1661 = vmatpush1.msra.mxu0 0.0
      %1662 = vmatprep.subr.mxu0 0.0
      %1663 = vmatpush1.msra.mxu0 0.0
      %1664 = vmatprep.subr.mxu0 0.0
      %1665 = vmatpush1.msra.mxu0 0.0
      %1666 = vmatprep.subr.mxu0 0.0
      %1667 = vmatpush1.msra.mxu0 0.0
      %1668 = vmatprep.subr.mxu0 0.0
      %1669 = vmatpush1.msra.mxu0 0.0
      %1670 = vmatprep.subr.mxu0 0.0
      %1671 = vmatpush1.msra.mxu0 0.0
      %1672 = vmatprep.subr.mxu0 0.0
      %1673 = vmatpush1.msra.mxu0 0.0
      %1674 = vmatprep.subr.mxu0 0.0
      %1675 = vmatpush1.msra.mxu0 0.0
      %1676 = vmatprep.subr.mxu0 0.0
      %1677 = vmatpush1.msra.mxu0 0.0
      %1678 = vmatprep.subr.mxu0 0.0
      %1679 = vmatpush1.msra.mxu0 0.0
      %1680 = vmatprep.subr.mxu0 0.0
      %1681 = vmatpush1.msra.mxu0 0.0
      %1682 = vmatprep.mubr.f32.mxu0 0.0
      %1683 = vmatmul.mubr.f32.gmra.mrb[0].mxu0 %v1616
      %v1684 = vpop.f32.mrb[0].mxu0
      %v1685 = vadd.f32 %v1613, %v1684
      %v1686 = vpop.f32.mrb[0].mxu0
      %1687 = vdwg.mxu0
      %v1688 = vadd.f32 %v1685, %v825
      %1690 = vrot.lane.b32.xlu0 %v1688, 2
      %v1691 = vpop.permute.xlu0 %1690
      %v1693 = vmul.f32 %v1691, %v430
      %1694 = vrot.lane.b32.xlu0 %v1688, 1
      %v1695 = vpop.permute.xlu0 %1694
      %v1697 = vmul.f32 %v1695, %v438
      %1698 = vrot.lane.b32.xlu0 %v1688, 127
      %v1699 = vpop.permute.xlu0 %1698
      %v1701 = vmul.f32 %v1699, %v446
      %1702 = vrot.lane.b32.xlu0 %v1688, 126
      %v1703 = vpop.permute.xlu0 %1702
      %v1705 = vmul.f32 %v1703, %v548
      %s1706 = scalar_lea.vmem %s2, 24
      %v1707 = vld [vmem:[%s1706] sm:$0xff]
      %1708 = vset.pattern.permute.xlu0 3
      %1709 = vperm.xlu0 %1708, %v449
      %v1710 = vpop.permute.xlu0 %1709
      %v1713 = vsel %vm556, %v1707, 0
      %1715 = vmatprep.subr.mxu0 0.0
      %1716 = vmatpush1.msra.mxu0 %v1693
      %1717 = vmatprep.subr.mxu0 0.0
      %1718 = vmatpush1.msra.mxu0 %v1697
      %1719 = vmatprep.subr.mxu0 0.0
      %1720 = vmatpush1.msra.mxu0 %v1688
      %1721 = vmatprep.subr.mxu0 0.0
      %1722 = vmatpush1.msra.mxu0 %v1701
      %1723 = vmatprep.subr.mxu0 0.0
      %1724 = vmatpush1.msra.mxu0 %v1705
      %1725 = vmatprep.subr.mxu0 0.0
      %1726 = vmatpush1.msra.mxu0 0.0
      %1727 = vmatprep.subr.mxu0 0.0
      %1728 = vmatpush1.msra.mxu0 0.0
      %1729 = vmatprep.subr.mxu0 0.0
      %1730 = vmatpush1.msra.mxu0 0.0
      %1731 = vmatprep.subr.mxu0 0.0
      %1732 = vmatpush1.msra.mxu0 0.0
      %1733 = vmatprep.subr.mxu0 0.0
      %1734 = vmatpush1.msra.mxu0 0.0
      %1735 = vmatprep.subr.mxu0 0.0
      %1736 = vmatpush1.msra.mxu0 0.0
      %1737 = vmatprep.subr.mxu0 0.0
      %1738 = vmatpush1.msra.mxu0 0.0
      %1739 = vmatprep.subr.mxu0 0.0
      %1740 = vmatpush1.msra.mxu0 0.0
      %1741 = vmatprep.subr.mxu0 0.0
      %1742 = vmatpush1.msra.mxu0 0.0
      %1743 = vmatprep.subr.mxu0 0.0
      %1744 = vmatpush1.msra.mxu0 0.0
      %1745 = vmatprep.subr.mxu0 0.0
      %1746 = vmatpush1.msra.mxu0 0.0
      %1747 = vmatprep.subr.mxu0 0.0
      %1748 = vmatpush1.msra.mxu0 0.0
      %1749 = vmatprep.subr.mxu0 0.0
      %1750 = vmatpush1.msra.mxu0 0.0
      %1751 = vmatprep.subr.mxu0 0.0
      %1752 = vmatpush1.msra.mxu0 0.0
      %1753 = vmatprep.subr.mxu0 0.0
      %1754 = vmatpush1.msra.mxu0 0.0
      %1755 = vmatprep.subr.mxu0 0.0
      %1756 = vmatpush1.msra.mxu0 0.0
      %1757 = vmatprep.subr.mxu0 0.0
      %1758 = vmatpush1.msra.mxu0 0.0
      %1759 = vmatprep.subr.mxu0 0.0
      %1760 = vmatpush1.msra.mxu0 0.0
      %1761 = vmatprep.subr.mxu0 0.0
      %1762 = vmatpush1.msra.mxu0 0.0
      %1763 = vmatprep.subr.mxu0 0.0
      %1764 = vmatpush1.msra.mxu0 0.0
      %1765 = vmatprep.subr.mxu0 0.0
      %1766 = vmatpush1.msra.mxu0 0.0
      %1767 = vmatprep.subr.mxu0 0.0
      %1768 = vmatpush1.msra.mxu0 0.0
      %1769 = vmatprep.subr.mxu0 0.0
      %1770 = vmatpush1.msra.mxu0 0.0
      %1771 = vmatprep.subr.mxu0 0.0
      %1772 = vmatpush1.msra.mxu0 0.0
      %1773 = vmatprep.subr.mxu0 0.0
      %1774 = vmatpush1.msra.mxu0 0.0
      %1775 = vmatprep.subr.mxu0 0.0
      %1776 = vmatpush1.msra.mxu0 0.0
      %1777 = vmatprep.subr.mxu0 0.0
      %1778 = vmatpush1.msra.mxu0 0.0
      %1779 = vmatprep.mubr.f32.mxu0 0.0
      %1780 = vmatmul.mubr.f32.gmra.mrb[0].mxu0 %v1713
      %v1781 = vpop.f32.mrb[0].mxu0
      %v1782 = vadd.f32 %v1710, %v1781
      %v1783 = vpop.f32.mrb[0].mxu0
      %1784 = vdwg.mxu0
      %v1785 = vmul.f32 %v1782, %v1782
      %1786 = vmatprep.subr.mxu0 0.0
      %1787 = vmatpush1.msra.mxu0 %v374
      %1788 = vmatprep.subr.mxu0 0.0
      %1789 = vmatpush1.msra.mxu0 %v375
      %1790 = vmatprep.subr.mxu0 0.0
      %1791 = vmatpush1.msra.mxu0 %v376
      %1792 = vmatprep.subr.mxu0 0.0
      %1793 = vmatpush1.msra.mxu0 %v377
      %1794 = vmatprep.subr.mxu0 0.0
      %1795 = vmatpush1.msra.mxu0 %v378
      %1796 = vmatprep.subr.mxu0 0.0
      %1797 = vmatpush1.msra.mxu0 %v379
      %1798 = vmatprep.subr.mxu0 0.0
      %1799 = vmatpush1.msra.mxu0 %v380
      %1800 = vmatprep.subr.mxu0 0.0
      %1801 = vmatpush1.msra.mxu0 %v381
      %1802 = vmatprep.subr.mxu0 0.0
      %1803 = vmatpush1.msra.mxu0 %v382
      %1804 = vmatprep.subr.mxu0 0.0
      %1805 = vmatpush1.msra.mxu0 %v383
      %1806 = vmatprep.subr.mxu0 0.0
      %1807 = vmatpush1.msra.mxu0 %v384
      %1808 = vmatprep.subr.mxu0 0.0
      %1809 = vmatpush1.msra.mxu0 %v385
      %1810 = vmatprep.subr.mxu0 0.0
      %1811 = vmatpush1.msra.mxu0 %v386
      %1812 = vmatprep.subr.mxu0 0.0
      %1813 = vmatpush1.msra.mxu0 %v387
      %1814 = vmatprep.subr.mxu0 0.0
      %1815 = vmatpush1.msra.mxu0 %v388
      %1816 = vmatprep.subr.mxu0 0.0
      %1817 = vmatpush1.msra.mxu0 %v389
      %1818 = vmatprep.subr.mxu0 0.0
      %1819 = vmatpush1.msra.mxu0 0.0
      %1820 = vmatprep.subr.mxu0 0.0
      %1821 = vmatpush1.msra.mxu0 0.0
      %1822 = vmatprep.subr.mxu0 0.0
      %1823 = vmatpush1.msra.mxu0 0.0
      %1824 = vmatprep.subr.mxu0 0.0
      %1825 = vmatpush1.msra.mxu0 0.0
      %1826 = vmatprep.subr.mxu0 0.0
      %1827 = vmatpush1.msra.mxu0 0.0
      %1828 = vmatprep.subr.mxu0 0.0
      %1829 = vmatpush1.msra.mxu0 0.0
      %1830 = vmatprep.subr.mxu0 0.0
      %1831 = vmatpush1.msra.mxu0 0.0
      %1832 = vmatprep.subr.mxu0 0.0
      %1833 = vmatpush1.msra.mxu0 0.0
      %1834 = vmatprep.subr.mxu0 0.0
      %1835 = vmatpush1.msra.mxu0 0.0
      %1836 = vmatprep.subr.mxu0 0.0
      %1837 = vmatpush1.msra.mxu0 0.0
      %1838 = vmatprep.subr.mxu0 0.0
      %1839 = vmatpush1.msra.mxu0 0.0
      %1840 = vmatprep.subr.mxu0 0.0
      %1841 = vmatpush1.msra.mxu0 0.0
      %1842 = vmatprep.subr.mxu0 0.0
      %1843 = vmatpush1.msra.mxu0 0.0
      %1844 = vmatprep.subr.mxu0 0.0
      %1845 = vmatpush1.msra.mxu0 0.0
      %1846 = vmatprep.subr.mxu0 0.0
      %1847 = vmatpush1.msra.mxu0 0.0
      %1848 = vmatprep.subr.mxu0 0.0
      %1849 = vmatpush1.msra.mxu0 0.0
      %1850 = vmatprep.mubr.f32.mxu0 0.0
      %1851 = vmatmul.mubr.f32.gmra.mrb[0].mxu0 %v1782
      %v1852 = vpop.f32.mrb[0].mxu0
      %v1853 = vadd.f32 0.0, %v1852
      %v1854 = vpop.f32.mrb[0].mxu0
      %1855 = vmatprep.mubr.f32.mxu0 0.0
      %1856 = vmatmul.mubr.f32.gmra.mrb[0].mxu0 %v1785
      %v1857 = vpop.f32.mrb[0].mxu0
      %v1858 = vadd.f32 0.0, %v1857
      %v1859 = vpop.f32.mrb[0].mxu0
      %1860 = vdwg.mxu0
      %v1861 = vmul.f32 %v1853, %v1853
      %v1862 = vsub.f32 %v1858, %v1861
      %v1863 = vsub.f32 %v1782, %v1853
      %v1864 = vadd.f32 %v1862, 1e-05
      %v1865 = vrsqrt.pop %v1864
      %v1866 = vmul.f32 %v1863, %v1865
      %v1867 = vlaneseq
      %v1868 = vshrl.u32 %v1867, 7
      %v1869 = vsub.s32 1, %v1868
      %v1870 = vrot.slane %v373, %v1869
      %v1871 = vmul.f32 %v1866, %v1870
      %v1872 = vlaneseq
      %v1873 = vshrl.u32 %v1872, 7
      %v1874 = vsub.s32 2, %v1873
      %v1875 = vrot.slane %v373, %v1874
      %v1876 = vadd.f32 %v1871, %v1875
      %v1877 = vmin.f32 %v1876, 20.0
      %v1878 = vmul.f32 %v1877, 1.442695
      %v1879 = vpow.pop %v1878
      %v1880 = vadd.f32 %v1879, 1.0
      %v1881 = vmul.f32 %v1880, %v1880
      %v1882 = vsub.f32 %v1881, 1.0
      %v1883 = vmul.f32 %v1876, %v1882
      %v1884 = vadd.f32 %v1881, 1.0
      %v1885 = vrcp.pop %v1884
      %v1886 = vmul.f32 %v1883, %v1885
      %v1887 = vld [vmem:[%s367] sm:$0xff]
      %v1888 = vadd.f32 %v1886, %v1887
      %1889 = vst [vmem:[%s371] sm:$0xff] %v1888
      %p1890 = scmp.lt.s32.totalorder %s21, 1
      %s1891 = scalar_select %p1890, %s21, 1
      %s1892 = smul.addr %s1891, 8
      %s1893 = scalar_lea.vmem %s10, %s1892
      // Predicated region
      $region61: #{upsampling_block_forward.1} parent=59 // pred_check
        %p1894 = pneg %p259
      $region62: #{upsampling_block_forward.1} parent=59 // pred_check_branch
        %1896 = sbr.rel (%p1894) target = $region64
      $region63: #{upsampling_block_forward.1} parent=59 // pred_region
        _
      $region64: #{upsampling_block_forward.1} parent=59 // pred_fallthru
        _
    $region60: #{upsampling_block_forward.1} parent=5 // pred_fallthru
      _
    %p1897 = scmp.le.s32.totalorder 2, %s16
    // Predicated region
    $region65: #{upsampling_block_forward.1} parent=5 // pred_check
      %p1898 = pneg %p1897
    $region66: #{upsampling_block_forward.1} parent=5 // pred_check_branch
      %1900 = sbr.rel (%p1898) target = $region68
    $region67: #{upsampling_block_forward.1} parent=5 // pred_region
      %s1901 = ssub.s32 %s16, 2
      // Predicated region
      $region69: #{upsampling_block_forward.1} parent=67 // pred_check
        %p1902 = pneg %p265
      $region70: #{upsampling_block_forward.1} parent=67 // pred_check_branch
        %1904 = sbr.rel (%p1902) target = $region72
      $region71: #{upsampling_block_forward.1} parent=67 // pred_region
        %p1905 = scmp.lt.s32.totalorder %s22, 1
        %s1906 = scalar_select %p1905, %s22, 1
        %s1907 = smul.addr %s1906, 8
        %s1908 = scalar_lea.vmem %s10, %s1907
      $region72: #{upsampling_block_forward.1} parent=67 // pred_fallthru
        _
    $region68: #{upsampling_block_forward.1} parent=5 // pred_fallthru
      _
  $region6: #{upsampling_block_forward.1} parent=0 // loop_footer
    %s20 = sadd.s32 1, %s16
  $region7: #{upsampling_block_forward.1} parent=0 // loop_footer_branch
    %15 = sbr.rel target = $region3
  $region8: #{upsampling_block_forward.1} parent=0 // loop_exit
    _

</llo_original>
